<compile_context>
chip_gen: v7x
topology: tpu7x:2x2x1
jax: 0.10.0
libtpu: 0.0.40
codegen_flags: <defaults>
</compile_context>

<pallas_src>
import functools

import numpy as np
import jax
import jax.numpy as jnp
from jax import lax
from jax.experimental import pallas as pl
from jax.experimental.pallas import tpu as pltpu


# ----------------------------------------------------------------------------
# config (deterministic, in-script)
# ----------------------------------------------------------------------------
class Config:
    circle_loss_log_scale = 16.0
    circle_loss_positive_optimal = 0.1
    circle_loss_negative_optimal = 1.4
    circle_loss_positive_margin = 0.1
    circle_loss_negative_margin = 1.4
    circle_loss_max_correspondence = 64
    loss_positive_radius = 0.05
    loss_negative_radius = 0.10
    saliency_loss_positive_radius = 0.05
    alpha_circle_loss = 1.0
    alpha_overlap_loss = 1.0
    alpha_saliency_loss = 1.0


_VSPEC = lambda: pl.BlockSpec(memory_space=pltpu.MemorySpace.VMEM)
_SSPEC = lambda: pl.BlockSpec(memory_space=pltpu.MemorySpace.SMEM)


def _ceil_to(x, m):
    return ((x + m - 1) // m) * m


# ----------------------------------------------------------------------------
# in-kernel helpers
# ----------------------------------------------------------------------------
def _pair_dist_sq(a, bt):
    """Squared Euclidean distance matrix between a [R,3] and b (transposed [3,S]).

    Contraction depth is 3 -> three VPU broadcast-subtract-square passes,
    no MXU, no sqrt (thresholds compare against squared radii).
    """
    d2 = None
    for c in range(a.shape[1]):
        diff = a[:, c:c + 1] - bt[c:c + 1, :]
        sq = diff * diff
        d2 = sq if d2 is None else d2 + sq
    return d2


def _first_match_onehot(values, extreme, idx_f, axis, fill):
    """One-hot (bool) of the FIRST index along `axis` where values == extreme."""
    first = jnp.min(jnp.where(values == extreme, idx_f, fill),
                    axis=axis, keepdims=True)
    return idx_f == first


def _col_to_row(col):
    """[R,1] -> [1,R] lane-dense, via diagonal select + sublane reduce.

    Avoids jnp.transpose relayout restrictions on (R,1) shapes; the [R,R]
    select is a handful of VPU vregs at these sizes.
    """
    r = col.shape[0]
    ri = lax.broadcasted_iota(jnp.int32, (r, r), 0)
    ci = lax.broadcasted_iota(jnp.int32, (r, r), 1)
    diag = jnp.where(ri == ci, jnp.broadcast_to(col, (r, r)), 0.0)
    return jnp.sum(diag, axis=0, keepdims=True)


def _bce(p, y):
    # BCELoss(reduction='none') with torch's -100 log clamp.
    log_p = jnp.maximum(jnp.log(p), -100.0)
    log_q = jnp.maximum(jnp.log(1.0 - p), -100.0)
    return -(y * log_p + (1.0 - y) * log_q)


def _softplus(x):
    return jnp.maximum(x, 0.0) + jnp.log1p(jnp.exp(-jnp.abs(x)))


# ----------------------------------------------------------------------------
# The single fused kernel
# ----------------------------------------------------------------------------
def _fused_kernel(lhs_ref, rhst_ref, sel_p0_ref, sel_p1t_ref,
                  sal0_ref, sal1_ref, ov_ref, ov_gt_ref,
                  p0c_ref, p1ct_ref,
                  stats_ref, *,
                  fxy_row_off, fxy_col_off,
                  log_scale, pos_optimal, neg_optimal, pos_margin, neg_margin,
                  pos_r2, neg_r2, sal_r2,
                  alpha_circle, alpha_overlap, alpha_saliency):
    f32 = jnp.float32
    n0 = sel_p0_ref.shape[0]
    n1 = sel_p1t_ref.shape[1]
    k = p0c_ref.shape[0]

    # ------------- single fused MXU contraction, slice diagonal blocks ------
    big = lax.dot_general(lhs_ref[...], rhst_ref[...],
                          (((1,), (0,)), ((), ())),
                          preferred_element_type=f32)
    scores = big[:n0, :n1]                                          # [n0,n1]
    fxy = big[fxy_row_off:fxy_row_off + k,
              fxy_col_off:fxy_col_off + k]                          # [K, K]

    # ------------- saliency GT: feature-space NN + squared-radius test ------
    cds2 = _pair_dist_sq(sel_p0_ref[...], sel_p1t_ref[...])         # [n0,n1]
    col_idx = lax.broadcasted_iota(jnp.int32, (n0, n1), 1).astype(f32)
    row_idx = lax.broadcasted_iota(jnp.int32, (n0, n1), 0).astype(f32)

    row_max = jnp.max(scores, axis=-1, keepdims=True)               # [n0,1]
    oh_row = _first_match_onehot(scores, row_max, col_idx, -1, f32(n1))
    d0_sq = jnp.sum(jnp.where(oh_row, cds2, 0.0), axis=-1, keepdims=True)
    d0_sq_row = _col_to_row(d0_sq)                                  # [1,n0]

    col_max = jnp.max(scores, axis=0, keepdims=True)                # [1,n1]
    oh_col = _first_match_onehot(scores, col_max, row_idx, 0, f32(n0))
    d1_sq = jnp.sum(jnp.where(oh_col, cds2, 0.0), axis=0, keepdims=True)

    gt0 = (d0_sq_row < sal_r2).astype(f32)                          # [1,n0]
    gt1 = (d1_sq < sal_r2).astype(f32)                              # [1,n1]

    # ------------- weighted BCE: saliency (lane-dense [1,n] halves) ---------
    sal0 = sal0_ref[...]                                            # [1,n0]
    sal1 = sal1_ref[...]                                            # [1,n1]
    n_sal = f32(n0 + n1)
    y_sum = jnp.sum(gt0) + jnp.sum(gt1)
    s_neg_w = y_sum / n_sal
    s_pos_w = 1.0 - s_neg_w
    w0 = jnp.where(gt0 >= 0.5, s_pos_w, s_neg_w)
    w1 = jnp.where(gt1 >= 0.5, s_pos_w, s_neg_w)
    sal_loss = (jnp.sum(w0 * _bce(sal0, gt0))
                + jnp.sum(w1 * _bce(sal1, gt1))) / n_sal

    # threshold at 0.5 (~ torch .round(); differs only at exactly 0.5)
    pred0 = (sal0 >= 0.5).astype(f32)
    pred1 = (sal1 >= 0.5).astype(f32)
    tp = jnp.sum(pred0 * gt0) + jnp.sum(pred1 * gt1)
    pp = jnp.sum(pred0) + jnp.sum(pred1)
    sal_prec = jnp.where(pp > 0, tp / jnp.maximum(pp, 1e-12), 0.0)
    sal_rec = jnp.where(y_sum > 0, tp / jnp.maximum(y_sum, 1e-12), 0.0)

    # ------------- weighted BCE: overlap -------------------------------------
    ovp = ov_ref[...]
    ovy = ov_gt_ref[...]
    n_ov = f32(ovp.shape[-1])
    oy_sum = jnp.sum(ovy)
    o_neg_w = oy_sum / n_ov
    o_pos_w = 1.0 - o_neg_w
    ow = jnp.where(ovy >= 0.5, o_pos_w, o_neg_w)
    ov_loss = jnp.sum(ow * _bce(ovp, ovy)) / n_ov
    opred = (ovp >= 0.5).astype(f32)
    otp = jnp.sum(opred * ovy)
    opp = jnp.sum(opred)
    ov_prec = jnp.where(opp > 0, otp / jnp.maximum(opp, 1e-12), 0.0)
    ov_rec = jnp.where(oy_sum > 0, otp / jnp.maximum(oy_sum, 1e-12), 0.0)

    # ------------- circle loss (pos branch, then neg branch) + recall -------
    cd2 = _pair_dist_sq(p0c_ref[...], p1ct_ref[...])                # [K,K]
    fd = jnp.sqrt(jnp.maximum(2.0 - 2.0 * fxy, 0.0))                # [K,K]

    # positive branch end-to-end (short live ranges)
    pos_mask = cd2 < pos_r2
    pos_mask_f = pos_mask.astype(f32)
    pos_row_cnt = jnp.sum(pos_mask_f, axis=-1, keepdims=True)       # [K,1]
    pos_col_cnt = jnp.sum(pos_mask_f, axis=0, keepdims=True)        # [1,K]
    pos_w = jnp.where(pos_mask, jnp.maximum(fd - pos_optimal, 0.0), 0.0)
    # clamp: no-op for L2-normalized features (lp<=~58), guards f32 exp overflow
    lp = jnp.minimum(log_scale * (fd - pos_margin) * pos_w, 80.0)
    e_p = jnp.exp(lp)
    sum_ep_row = jnp.sum(e_p, axis=-1, keepdims=True)
    sum_ep_col = jnp.sum(e_p, axis=0, keepdims=True)

    # negative branch
    neg_mask = cd2 > neg_r2
    neg_mask_f = neg_mask.astype(f32)
    neg_row_cnt = jnp.sum(neg_mask_f, axis=-1, keepdims=True)
    neg_col_cnt = jnp.sum(neg_mask_f, axis=0, keepdims=True)
    neg_w = jnp.where(neg_mask, jnp.maximum(neg_optimal - fd, 0.0), 0.0)
    ln_ = jnp.minimum(log_scale * (neg_margin - fd) * neg_w, 80.0)
    e_n = jnp.exp(ln_)
    sum_en_row = jnp.sum(e_n, axis=-1, keepdims=True)
    sum_en_col = jnp.sum(e_n, axis=0, keepdims=True)

    # row/col selection; guard folded into the product (tiny -> softplus ~ 0)
    row_sel = jnp.logical_and(pos_row_cnt > 0, neg_row_cnt > 0)     # [K,1]
    col_sel = jnp.logical_and(pos_col_cnt > 0, neg_col_cnt > 0)     # [1,K]
    row_sel_f = row_sel.astype(f32)
    col_sel_f = col_sel.astype(f32)
    prod_row = jnp.where(row_sel, sum_ep_row * sum_en_row, 1e-20)
    prod_col = jnp.where(col_sel, sum_ep_col * sum_en_col, 1e-20)
    prod_row_t = _col_to_row(prod_row)                              # [1,K]

    # merged logs: log(sum_ep) + log(sum_en) == log(sum_ep * sum_en)
    loss_row = _softplus(jnp.log(prod_row_t)) / log_scale           # [1,K]
    loss_col = _softplus(jnp.log(prod_col)) / log_scale             # [1,K]

    # guarded denominators (reference NaNs when a selection is empty; the
    # numerator is ~0 in that case so the guard yields 0 instead of NaN)
    circle = 0.5 * (jnp.sum(loss_row) / jnp.maximum(jnp.sum(row_sel_f), 1.0)
                    + jnp.sum(loss_col) / jnp.maximum(jnp.sum(col_sel_f), 1.0))

    # recall: nearest neighbor in feature space (first index on ties)
    cidx = lax.broadcasted_iota(jnp.int32, (k, k), 1).astype(f32)
    min_fd = jnp.min(fd, axis=-1, keepdims=True)
    oh_nn = _first_match_onehot(fd, min_fd, cidx, -1, f32(k))
    nn_cd2 = jnp.sum(jnp.where(oh_nn, cd2, 0.0), axis=-1, keepdims=True)
    pos_row = (pos_row_cnt > 0).astype(f32)                         # reused count
    num_gt = jnp.sum(pos_row) + 1e-12
    num_pred = jnp.sum((nn_cd2 < pos_r2).astype(f32) * pos_row)
    recall = num_pred / num_gt

    # ------------- scalar outputs --------------------------------------------
    stats_ref[0] = sal_loss
    stats_ref[1] = sal_prec
    stats_ref[2] = sal_rec
    stats_ref[3] = ov_loss
    stats_ref[4] = ov_prec
    stats_ref[5] = ov_rec
    stats_ref[6] = circle
    stats_ref[7] = recall
    stats_ref[8] = (circle * alpha_circle + ov_loss * alpha_overlap
                    + sal_loss * alpha_saliency)


def pallas_predator_fused(lhs, rhst, sel_p0, sel_p1t, sal0, sal1, ov, gt_ov,
                          p0c, p1ct, fxy_row_off, fxy_col_off, cfg):
    kern = functools.partial(
        _fused_kernel,
        fxy_row_off=int(fxy_row_off),
        fxy_col_off=int(fxy_col_off),
        log_scale=float(cfg.circle_loss_log_scale),
        pos_optimal=float(cfg.circle_loss_positive_optimal),
        neg_optimal=float(cfg.circle_loss_negative_optimal),
        pos_margin=float(cfg.circle_loss_positive_margin),
        neg_margin=float(cfg.circle_loss_negative_margin),
        pos_r2=float(cfg.loss_positive_radius) ** 2,
        neg_r2=float(cfg.loss_negative_radius) ** 2,
        sal_r2=float(cfg.saliency_loss_positive_radius) ** 2,
        alpha_circle=float(cfg.alpha_circle_loss),
        alpha_overlap=float(cfg.alpha_overlap_loss),
        alpha_saliency=float(cfg.alpha_saliency_loss))
    args = tuple(jnp.asarray(a, jnp.float32) for a in
                 (lhs, rhst, sel_p0, sel_p1t, sal0, sal1, ov, gt_ov, p0c, p1ct))
    return pl.pallas_call(
        kern,
        out_shape=jax.ShapeDtypeStruct((9,), jnp.float32),
        in_specs=[_VSPEC()] * len(args),
        out_specs=_SSPEC(),
        compiler_params=pltpu.CompilerParams(vmem_limit_bytes=48 * 1024 * 1024),
    )(*args)


# ----------------------------------------------------------------------------
# Device-side glue (jitted): transform, gathers, scatter, matmul operand prep
# ----------------------------------------------------------------------------
def apply_transform(points, transform):
    rot = transform[:3, :3]
    trans = transform[:3, 3]
    return points @ rot.T + trans


@functools.partial(jax.jit, static_argnames=("cfg",))
def _device_forward(points0, points1, feats0, feats1, transform,
                    overlap_scores, saliency_scores,
                    indices0, indices1, ci0, ci1, *, cfg):
    f32 = jnp.float32
    length0, length1 = points0.shape[0], points1.shape[0]
    points1_t = apply_transform(points1, transform)

    sel_f0, sel_p0 = feats0[indices0], points0[indices0]
    sel_f1, sel_p1 = feats1[indices1], points1_t[indices1]

    # saliency scores in lane-dense [1, n] layout
    sal0 = saliency_scores[:length0][indices0].reshape(1, -1)
    sal1 = saliency_scores[length0:][indices1].reshape(1, -1)

    # overlap ground truth via on-device scatter
    ov0 = jnp.zeros((length0,), f32).at[indices0].set(1.0)
    ov1 = jnp.zeros((length1,), f32).at[indices1].set(1.0)
    gt_ov = jnp.concatenate([ov0, ov1]).reshape(1, -1)
    ov = overlap_scores.reshape(1, -1)

    # circle-loss correspondences
    p0c, p1c = points0[ci0], points1_t[ci1]
    f0c, f1c = feats0[ci0], feats1[ci1]

    # pack both feature matmuls into ONE MXU contraction:
    #   lhs  = [sel_f0 ; 0-pad ; f0c]              (rows aligned to x8)
    #   rhsT = [sel_f1 ; 0-pad ; f1c]^T            (f1c block at a 128-lane
    #                                               aligned column offset)
    n0, n1, kk = sel_f0.shape[0], sel_f1.shape[0], f0c.shape[0]
    c = feats0.shape[1]
    n0p = _ceil_to(n0, 8)
    n1p = _ceil_to(n1, 128)
    kp = _ceil_to(kk, 8)
    lhs = (jnp.zeros((n0p + kp, c), f32)
           .at[:n0, :].set(sel_f0)
           .at[n0p:n0p + kk, :].set(f0c))
    rhs = (jnp.zeros((n1p + kp, c), f32)
           .at[:n1, :].set(sel_f1)
           .at[n1p:n1p + kk, :].set(f1c))
    rhst = rhs.T                                              # [C, n1p+kp]

    return pallas_predator_fused(lhs, rhst,
                                 sel_p0, sel_p1.T, sal0, sal1, ov, gt_ov,
                                 p0c, p1c.T, n0p, n1p, cfg)


# ----------------------------------------------------------------------------
# Host-side index prep (data-dependent shapes) + stats dict
# ----------------------------------------------------------------------------
def predator_loss_forward(points0, points1, feats0, feats1, correspondences_np,
                          transform, overlap_scores, saliency_scores, cfg):
    corr = np.asarray(correspondences_np)
    # list(set(...)) in torch -> unique indices; host-side (shape is data-dep.)
    indices0 = np.unique(corr[:, 0]).astype(np.int32)
    indices1 = np.unique(corr[:, 1]).astype(np.int32)

    if corr.shape[0] > cfg.circle_loss_max_correspondence:
        # TODO(synk): reference uses np.random.permutation; deterministic rng here.
        choice = np.random.default_rng(0).permutation(corr.shape[0])
        corr = corr[choice[:cfg.circle_loss_max_correspondence]]
    ci0 = jnp.asarray(corr[:, 0].astype(np.int32))
    ci1 = jnp.asarray(corr[:, 1].astype(np.int32))

    s = _device_forward(points0, points1, feats0, feats1, transform,
                        overlap_scores, saliency_scores,
                        jnp.asarray(indices0), jnp.asarray(indices1),
                        ci0, ci1, cfg=cfg)
    stats = {
        'saliency_loss': s[0],
        'saliency_precision': s[1],
        'saliency_recall': s[2],
        'overlap_loss': s[3],
        'overlap_precision': s[4],
        'overlap_recall': s[5],
        'circle_loss': s[6],
        'recall': s[7],
        'overall_loss': s[8],
    }
    return stats


# ----------------------------------------------------------------------------
# main
# ----------------------------------------------------------------------------
if __name__ == "__main__":
    cfg = Config()
    key = jax.random.PRNGKey(0)
    k1, k2, k3, k4, k5, k6 = jax.random.split(key, 6)

    N, M, C, P = 64, 64, 32, 40

    points0 = jax.random.uniform(k1, (N, 3), jnp.float32)
    trans = jnp.array([0.05, -0.03, 0.02], jnp.float32)
    transform = jnp.eye(4, dtype=jnp.float32).at[:3, 3].set(trans)
    noise = 0.01 * jax.random.normal(k2, (M, 3), jnp.float32)
    # apply_transform(points1, transform) ~= points0 + noise  (true corr i<->i)
    points1 = points0 + noise - trans

    feats0 = jax.random.normal(k3, (N, C), jnp.float32)
    feats0 = feats0 / jnp.linalg.norm(feats0, axis=1, keepdims=True)
    feats1 = feats0 + 0.3 * jax.random.normal(k4, (M, C), jnp.float32)
    feats1 = feats1 / jnp.linalg.norm(feats1, axis=1, keepdims=True)

    correspondences = np.stack([np.arange(P), np.arange(P)], axis=1).astype(np.int32)

    overlap_scores = jax.nn.sigmoid(jax.random.normal(k5, (N + M,), jnp.float32))
    saliency_scores = jax.nn.sigmoid(jax.random.normal(k6, (N + M,), jnp.float32))

    stats = predator_loss_forward(points0, points1, feats0, feats1,
                                  correspondences, transform,
                                  overlap_scores, saliency_scores, cfg)
    jax.block_until_ready(stats['overall_loss'])
    print("KERNEL_OK")
</pallas_src>

<mosaic_0001>
module attributes {stable_mosaic.version = 11 : i64} {
  func.func @_fused_kernel(%arg0: memref<80x32xf32, #tpu.memory_space<vmem>>, %arg1: memref<32x168xf32, #tpu.memory_space<vmem>>, %arg2: memref<40x3xf32, #tpu.memory_space<vmem>>, %arg3: memref<3x40xf32, #tpu.memory_space<vmem>>, %arg4: memref<1x40xf32, #tpu.memory_space<vmem>>, %arg5: memref<1x40xf32, #tpu.memory_space<vmem>>, %arg6: memref<1x128xf32, #tpu.memory_space<vmem>>, %arg7: memref<1x128xf32, #tpu.memory_space<vmem>>, %arg8: memref<40x3xf32, #tpu.memory_space<vmem>>, %arg9: memref<3x40xf32, #tpu.memory_space<vmem>>, %arg10: memref<9xf32, #tpu.memory_space<smem>>) attributes {dimension_semantics = [], scalar_prefetch = 0 : i64, scratch_operands = 0 : i64, tpu.core_type = #tpu.core_type<tc>} {
    %c0 = arith.constant 0 : index
    %c0_0 = arith.constant 0 : index
    %0 = vector.load %arg0[%c0, %c0_0] : memref<80x32xf32, #tpu.memory_space<vmem>>, vector<80x32xf32>
    %c0_1 = arith.constant 0 : index
    %c0_2 = arith.constant 0 : index
    %1 = vector.load %arg1[%c0_1, %c0_2] : memref<32x168xf32, #tpu.memory_space<vmem>>, vector<32x168xf32>
    %cst = arith.constant dense<0.000000e+00> : vector<80x168xf32>
    %2 = tpu.matmul %0, %1, %cst {dimension_numbers = #tpu.dot_dimension_numbers<[1], [0], [0], [1], [0, 0, 1, 1], [], []>} : vector<80x32xf32>, vector<32x168xf32>, vector<80x168xf32> -> vector<80x168xf32>
    %3 = vector.extract_strided_slice %2 {offsets = [0, 0], sizes = [40, 40], strides = [1, 1]} : vector<80x168xf32> to vector<40x40xf32>
    %4 = vector.extract_strided_slice %2 {offsets = [40, 128], sizes = [40, 40], strides = [1, 1]} : vector<80x168xf32> to vector<40x40xf32>
    %c0_3 = arith.constant 0 : index
    %c0_4 = arith.constant 0 : index
    %5 = vector.load %arg2[%c0_3, %c0_4] : memref<40x3xf32, #tpu.memory_space<vmem>>, vector<40x3xf32>
    %c0_5 = arith.constant 0 : index
    %c0_6 = arith.constant 0 : index
    %6 = vector.load %arg3[%c0_5, %c0_6] : memref<3x40xf32, #tpu.memory_space<vmem>>, vector<3x40xf32>
    %7 = vector.extract_strided_slice %5 {offsets = [0, 0], sizes = [40, 1], strides = [1, 1]} : vector<40x3xf32> to vector<40x1xf32>
    %8 = vector.extract_strided_slice %6 {offsets = [0, 0], sizes = [1, 40], strides = [1, 1]} : vector<3x40xf32> to vector<1x40xf32>
    %9 = vector.broadcast %7 : vector<40x1xf32> to vector<40x40xf32>
    %10 = vector.broadcast %8 : vector<1x40xf32> to vector<40x40xf32>
    %11 = arith.subf %9, %10 : vector<40x40xf32>
    %12 = arith.mulf %11, %11 : vector<40x40xf32>
    %13 = vector.extract_strided_slice %5 {offsets = [0, 1], sizes = [40, 1], strides = [1, 1]} : vector<40x3xf32> to vector<40x1xf32>
    %14 = vector.extract_strided_slice %6 {offsets = [1, 0], sizes = [1, 40], strides = [1, 1]} : vector<3x40xf32> to vector<1x40xf32>
    %15 = vector.broadcast %13 : vector<40x1xf32> to vector<40x40xf32>
    %16 = vector.broadcast %14 : vector<1x40xf32> to vector<40x40xf32>
    %17 = arith.subf %15, %16 : vector<40x40xf32>
    %18 = arith.mulf %17, %17 : vector<40x40xf32>
    %19 = arith.addf %12, %18 : vector<40x40xf32>
    %20 = vector.extract_strided_slice %5 {offsets = [0, 2], sizes = [40, 1], strides = [1, 1]} : vector<40x3xf32> to vector<40x1xf32>
    %21 = vector.extract_strided_slice %6 {offsets = [2, 0], sizes = [1, 40], strides = [1, 1]} : vector<3x40xf32> to vector<1x40xf32>
    %22 = vector.broadcast %20 : vector<40x1xf32> to vector<40x40xf32>
    %23 = vector.broadcast %21 : vector<1x40xf32> to vector<40x40xf32>
    %24 = arith.subf %22, %23 : vector<40x40xf32>
    %25 = arith.mulf %24, %24 : vector<40x40xf32>
    %26 = arith.addf %19, %25 : vector<40x40xf32>
    %27 = tpu.iota {dimensions = array<i32: 1>} : vector<40x40xi32>
    %28 = arith.sitofp %27 : vector<40x40xi32> to vector<40x40xf32>
    %29 = tpu.iota {dimensions = array<i32: 0>} : vector<40x40xi32>
    %30 = arith.sitofp %29 : vector<40x40xi32> to vector<40x40xf32>
    %cst_7 = arith.constant dense<0xFF800000> : vector<40xf32>
    %31 = vector.multi_reduction <maximumf>, %3, %cst_7 [1] : vector<40x40xf32> to vector<40xf32>
    %32 = vector.shape_cast %31 : vector<40xf32> to vector<40x1xf32>
    %33 = vector.broadcast %32 : vector<40x1xf32> to vector<40x40xf32>
    %34 = arith.cmpf oeq, %3, %33 : vector<40x40xf32>
    %cst_8 = arith.constant 4.000000e+01 : f32
    %35 = vector.broadcast %cst_8 : f32 to vector<40x40xf32>
    %36 = arith.select %34, %28, %35 : vector<40x40xi1>, vector<40x40xf32>
    %cst_9 = arith.constant dense<0x7F800000> : vector<40xf32>
    %37 = vector.multi_reduction <minimumf>, %36, %cst_9 [1] : vector<40x40xf32> to vector<40xf32>
    %38 = vector.shape_cast %37 : vector<40xf32> to vector<40x1xf32>
    %39 = vector.broadcast %38 : vector<40x1xf32> to vector<40x40xf32>
    %40 = arith.cmpf oeq, %28, %39 : vector<40x40xf32>
    %cst_10 = arith.constant 0.000000e+00 : f32
    %41 = vector.broadcast %cst_10 : f32 to vector<40x40xf32>
    %42 = arith.select %40, %26, %41 : vector<40x40xi1>, vector<40x40xf32>
    %cst_11 = arith.constant dense<0.000000e+00> : vector<40xf32>
    %43 = vector.multi_reduction <add>, %42, %cst_11 [1] : vector<40x40xf32> to vector<40xf32>
    %44 = vector.shape_cast %43 : vector<40xf32> to vector<40x1xf32>
    %45 = tpu.iota {dimensions = array<i32: 0>} : vector<40x40xi32>
    %46 = tpu.iota {dimensions = array<i32: 1>} : vector<40x40xi32>
    %47 = arith.cmpi eq, %45, %46 : vector<40x40xi32>
    %48 = vector.shape_cast %44 : vector<40x1xf32> to vector<40x1xf32>
    %49 = vector.broadcast %48 : vector<40x1xf32> to vector<40x40xf32>
    %cst_12 = arith.constant 0.000000e+00 : f32
    %50 = vector.broadcast %cst_12 : f32 to vector<40x40xf32>
    %51 = arith.select %47, %49, %50 : vector<40x40xi1>, vector<40x40xf32>
    %cst_13 = arith.constant dense<0.000000e+00> : vector<40xf32>
    %52 = vector.multi_reduction <add>, %51, %cst_13 [0] : vector<40x40xf32> to vector<40xf32>
    %53 = vector.shape_cast %52 : vector<40xf32> to vector<1x40xf32>
    %cst_14 = arith.constant dense<0xFF800000> : vector<40xf32>
    %54 = vector.multi_reduction <maximumf>, %3, %cst_14 [0] : vector<40x40xf32> to vector<40xf32>
    %55 = vector.shape_cast %54 : vector<40xf32> to vector<1x40xf32>
    %56 = vector.broadcast %55 : vector<1x40xf32> to vector<40x40xf32>
    %57 = arith.cmpf oeq, %3, %56 : vector<40x40xf32>
    %cst_15 = arith.constant 4.000000e+01 : f32
    %58 = vector.broadcast %cst_15 : f32 to vector<40x40xf32>
    %59 = arith.select %57, %30, %58 : vector<40x40xi1>, vector<40x40xf32>
    %cst_16 = arith.constant dense<0x7F800000> : vector<40xf32>
    %60 = vector.multi_reduction <minimumf>, %59, %cst_16 [0] : vector<40x40xf32> to vector<40xf32>
    %61 = vector.shape_cast %60 : vector<40xf32> to vector<1x40xf32>
    %62 = vector.broadcast %61 : vector<1x40xf32> to vector<40x40xf32>
    %63 = arith.cmpf oeq, %30, %62 : vector<40x40xf32>
    %cst_17 = arith.constant 0.000000e+00 : f32
    %64 = vector.broadcast %cst_17 : f32 to vector<40x40xf32>
    %65 = arith.select %63, %26, %64 : vector<40x40xi1>, vector<40x40xf32>
    %cst_18 = arith.constant dense<0.000000e+00> : vector<40xf32>
    %66 = vector.multi_reduction <add>, %65, %cst_18 [0] : vector<40x40xf32> to vector<40xf32>
    %67 = vector.shape_cast %66 : vector<40xf32> to vector<1x40xf32>
    %cst_19 = arith.constant 2.500000e-03 : f32
    %68 = vector.broadcast %cst_19 : f32 to vector<1x40xf32>
    %69 = arith.cmpf olt, %53, %68 : vector<1x40xf32>
    %70 = arith.extui %69 : vector<1x40xi1> to vector<1x40xi32>
    %71 = arith.sitofp %70 : vector<1x40xi32> to vector<1x40xf32>
    %cst_20 = arith.constant 2.500000e-03 : f32
    %72 = vector.broadcast %cst_20 : f32 to vector<1x40xf32>
    %73 = arith.cmpf olt, %67, %72 : vector<1x40xf32>
    %74 = arith.extui %73 : vector<1x40xi1> to vector<1x40xi32>
    %75 = arith.sitofp %74 : vector<1x40xi32> to vector<1x40xf32>
    %c0_21 = arith.constant 0 : index
    %c0_22 = arith.constant 0 : index
    %76 = vector.load %arg4[%c0_21, %c0_22] : memref<1x40xf32, #tpu.memory_space<vmem>>, vector<1x40xf32>
    %c0_23 = arith.constant 0 : index
    %c0_24 = arith.constant 0 : index
    %77 = vector.load %arg5[%c0_23, %c0_24] : memref<1x40xf32, #tpu.memory_space<vmem>>, vector<1x40xf32>
    %78 = vector.shape_cast %71 : vector<1x40xf32> to vector<1x1x40xf32>
    %cst_25 = arith.constant dense<0.000000e+00> : vector<1xf32>
    %79 = vector.multi_reduction <add>, %78, %cst_25 [1, 2] : vector<1x1x40xf32> to vector<1xf32>
    %80 = vector.shape_cast %79 : vector<1xf32> to vector<1x1x1xf32>
    %81 = vector.extract %80[0, 0, 0] : f32 from vector<1x1x1xf32>
    %82 = vector.shape_cast %75 : vector<1x40xf32> to vector<1x1x40xf32>
    %cst_26 = arith.constant dense<0.000000e+00> : vector<1xf32>
    %83 = vector.multi_reduction <add>, %82, %cst_26 [1, 2] : vector<1x1x40xf32> to vector<1xf32>
    %84 = vector.shape_cast %83 : vector<1xf32> to vector<1x1x1xf32>
    %85 = vector.extract %84[0, 0, 0] : f32 from vector<1x1x1xf32>
    %86 = arith.addf %81, %85 : f32
    %cst_27 = arith.constant 8.000000e+01 : f32
    %87 = arith.divf %86, %cst_27 : f32
    %cst_28 = arith.constant 1.000000e+00 : f32
    %88 = arith.subf %cst_28, %87 : f32
    %cst_29 = arith.constant 5.000000e-01 : f32
    %89 = vector.broadcast %cst_29 : f32 to vector<1x40xf32>
    %90 = arith.cmpf oge, %71, %89 : vector<1x40xf32>
    %91 = vector.broadcast %88 : f32 to vector<1x40xf32>
    %92 = vector.broadcast %87 : f32 to vector<1x40xf32>
    %93 = arith.select %90, %91, %92 : vector<1x40xi1>, vector<1x40xf32>
    %cst_30 = arith.constant 5.000000e-01 : f32
    %94 = vector.broadcast %cst_30 : f32 to vector<1x40xf32>
    %95 = arith.cmpf oge, %75, %94 : vector<1x40xf32>
    %96 = vector.broadcast %88 : f32 to vector<1x40xf32>
    %97 = vector.broadcast %87 : f32 to vector<1x40xf32>
    %98 = arith.select %95, %96, %97 : vector<1x40xi1>, vector<1x40xf32>
    %99 = math.log %76 : vector<1x40xf32>
    %cst_31 = arith.constant -1.000000e+02 : f32
    %100 = vector.broadcast %cst_31 : f32 to vector<1x40xf32>
    %101 = arith.maximumf %99, %100 : vector<1x40xf32>
    %cst_32 = arith.constant 1.000000e+00 : f32
    %102 = vector.broadcast %cst_32 : f32 to vector<1x40xf32>
    %103 = arith.subf %102, %76 : vector<1x40xf32>
    %104 = math.log %103 : vector<1x40xf32>
    %cst_33 = arith.constant -1.000000e+02 : f32
    %105 = vector.broadcast %cst_33 : f32 to vector<1x40xf32>
    %106 = arith.maximumf %104, %105 : vector<1x40xf32>
    %107 = arith.mulf %71, %101 : vector<1x40xf32>
    %cst_34 = arith.constant 1.000000e+00 : f32
    %108 = vector.broadcast %cst_34 : f32 to vector<1x40xf32>
    %109 = arith.subf %108, %71 : vector<1x40xf32>
    %110 = arith.mulf %109, %106 : vector<1x40xf32>
    %111 = arith.addf %107, %110 : vector<1x40xf32>
    %cst_35 = arith.constant 0.000000e+00 : f32
    %112 = vector.broadcast %cst_35 : f32 to vector<1x40xf32>
    %113 = arith.subf %112, %111 : vector<1x40xf32>
    %114 = arith.mulf %93, %113 : vector<1x40xf32>
    %115 = vector.shape_cast %114 : vector<1x40xf32> to vector<1x1x40xf32>
    %cst_36 = arith.constant dense<0.000000e+00> : vector<1xf32>
    %116 = vector.multi_reduction <add>, %115, %cst_36 [1, 2] : vector<1x1x40xf32> to vector<1xf32>
    %117 = vector.shape_cast %116 : vector<1xf32> to vector<1x1x1xf32>
    %118 = vector.extract %117[0, 0, 0] : f32 from vector<1x1x1xf32>
    %119 = math.log %77 : vector<1x40xf32>
    %cst_37 = arith.constant -1.000000e+02 : f32
    %120 = vector.broadcast %cst_37 : f32 to vector<1x40xf32>
    %121 = arith.maximumf %119, %120 : vector<1x40xf32>
    %cst_38 = arith.constant 1.000000e+00 : f32
    %122 = vector.broadcast %cst_38 : f32 to vector<1x40xf32>
    %123 = arith.subf %122, %77 : vector<1x40xf32>
    %124 = math.log %123 : vector<1x40xf32>
    %cst_39 = arith.constant -1.000000e+02 : f32
    %125 = vector.broadcast %cst_39 : f32 to vector<1x40xf32>
    %126 = arith.maximumf %124, %125 : vector<1x40xf32>
    %127 = arith.mulf %75, %121 : vector<1x40xf32>
    %cst_40 = arith.constant 1.000000e+00 : f32
    %128 = vector.broadcast %cst_40 : f32 to vector<1x40xf32>
    %129 = arith.subf %128, %75 : vector<1x40xf32>
    %130 = arith.mulf %129, %126 : vector<1x40xf32>
    %131 = arith.addf %127, %130 : vector<1x40xf32>
    %cst_41 = arith.constant 0.000000e+00 : f32
    %132 = vector.broadcast %cst_41 : f32 to vector<1x40xf32>
    %133 = arith.subf %132, %131 : vector<1x40xf32>
    %134 = arith.mulf %98, %133 : vector<1x40xf32>
    %135 = vector.shape_cast %134 : vector<1x40xf32> to vector<1x1x40xf32>
    %cst_42 = arith.constant dense<0.000000e+00> : vector<1xf32>
    %136 = vector.multi_reduction <add>, %135, %cst_42 [1, 2] : vector<1x1x40xf32> to vector<1xf32>
    %137 = vector.shape_cast %136 : vector<1xf32> to vector<1x1x1xf32>
    %138 = vector.extract %137[0, 0, 0] : f32 from vector<1x1x1xf32>
    %139 = arith.addf %118, %138 : f32
    %cst_43 = arith.constant 8.000000e+01 : f32
    %140 = arith.divf %139, %cst_43 : f32
    %cst_44 = arith.constant 5.000000e-01 : f32
    %141 = vector.broadcast %cst_44 : f32 to vector<1x40xf32>
    %142 = arith.cmpf oge, %76, %141 : vector<1x40xf32>
    %143 = arith.extui %142 : vector<1x40xi1> to vector<1x40xi32>
    %144 = arith.sitofp %143 : vector<1x40xi32> to vector<1x40xf32>
    %cst_45 = arith.constant 5.000000e-01 : f32
    %145 = vector.broadcast %cst_45 : f32 to vector<1x40xf32>
    %146 = arith.cmpf oge, %77, %145 : vector<1x40xf32>
    %147 = arith.extui %146 : vector<1x40xi1> to vector<1x40xi32>
    %148 = arith.sitofp %147 : vector<1x40xi32> to vector<1x40xf32>
    %149 = arith.mulf %144, %71 : vector<1x40xf32>
    %150 = vector.shape_cast %149 : vector<1x40xf32> to vector<1x1x40xf32>
    %cst_46 = arith.constant dense<0.000000e+00> : vector<1xf32>
    %151 = vector.multi_reduction <add>, %150, %cst_46 [1, 2] : vector<1x1x40xf32> to vector<1xf32>
    %152 = vector.shape_cast %151 : vector<1xf32> to vector<1x1x1xf32>
    %153 = vector.extract %152[0, 0, 0] : f32 from vector<1x1x1xf32>
    %154 = arith.mulf %148, %75 : vector<1x40xf32>
    %155 = vector.shape_cast %154 : vector<1x40xf32> to vector<1x1x40xf32>
    %cst_47 = arith.constant dense<0.000000e+00> : vector<1xf32>
    %156 = vector.multi_reduction <add>, %155, %cst_47 [1, 2] : vector<1x1x40xf32> to vector<1xf32>
    %157 = vector.shape_cast %156 : vector<1xf32> to vector<1x1x1xf32>
    %158 = vector.extract %157[0, 0, 0] : f32 from vector<1x1x1xf32>
    %159 = arith.addf %153, %158 : f32
    %160 = vector.shape_cast %144 : vector<1x40xf32> to vector<1x1x40xf32>
    %cst_48 = arith.constant dense<0.000000e+00> : vector<1xf32>
    %161 = vector.multi_reduction <add>, %160, %cst_48 [1, 2] : vector<1x1x40xf32> to vector<1xf32>
    %162 = vector.shape_cast %161 : vector<1xf32> to vector<1x1x1xf32>
    %163 = vector.extract %162[0, 0, 0] : f32 from vector<1x1x1xf32>
    %164 = vector.shape_cast %148 : vector<1x40xf32> to vector<1x1x40xf32>
    %cst_49 = arith.constant dense<0.000000e+00> : vector<1xf32>
    %165 = vector.multi_reduction <add>, %164, %cst_49 [1, 2] : vector<1x1x40xf32> to vector<1xf32>
    %166 = vector.shape_cast %165 : vector<1xf32> to vector<1x1x1xf32>
    %167 = vector.extract %166[0, 0, 0] : f32 from vector<1x1x1xf32>
    %168 = arith.addf %163, %167 : f32
    %cst_50 = arith.constant 0.000000e+00 : f32
    %169 = arith.cmpf ogt, %168, %cst_50 : f32
    %cst_51 = arith.constant 9.99999996E-13 : f32
    %170 = arith.maximumf %168, %cst_51 : f32
    %171 = arith.divf %159, %170 : f32
    %cst_52 = arith.constant 0.000000e+00 : f32
    %172 = arith.select %169, %171, %cst_52 : f32
    %cst_53 = arith.constant 0.000000e+00 : f32
    %173 = arith.cmpf ogt, %86, %cst_53 : f32
    %cst_54 = arith.constant 9.99999996E-13 : f32
    %174 = arith.maximumf %86, %cst_54 : f32
    %175 = arith.divf %159, %174 : f32
    %cst_55 = arith.constant 0.000000e+00 : f32
    %176 = arith.select %173, %175, %cst_55 : f32
    %c0_56 = arith.constant 0 : index
    %c0_57 = arith.constant 0 : index
    %177 = vector.load %arg6[%c0_56, %c0_57] : memref<1x128xf32, #tpu.memory_space<vmem>>, vector<1x128xf32>
    %c0_58 = arith.constant 0 : index
    %c0_59 = arith.constant 0 : index
    %178 = vector.load %arg7[%c0_58, %c0_59] : memref<1x128xf32, #tpu.memory_space<vmem>>, vector<1x128xf32>
    %179 = vector.shape_cast %178 : vector<1x128xf32> to vector<1x1x128xf32>
    %cst_60 = arith.constant dense<0.000000e+00> : vector<1xf32>
    %180 = vector.multi_reduction <add>, %179, %cst_60 [1, 2] : vector<1x1x128xf32> to vector<1xf32>
    %181 = vector.shape_cast %180 : vector<1xf32> to vector<1x1x1xf32>
    %182 = vector.extract %181[0, 0, 0] : f32 from vector<1x1x1xf32>
    %cst_61 = arith.constant 1.280000e+02 : f32
    %183 = arith.divf %182, %cst_61 : f32
    %cst_62 = arith.constant 1.000000e+00 : f32
    %184 = arith.subf %cst_62, %183 : f32
    %cst_63 = arith.constant 5.000000e-01 : f32
    %185 = vector.broadcast %cst_63 : f32 to vector<1x128xf32>
    %186 = arith.cmpf oge, %178, %185 : vector<1x128xf32>
    %187 = vector.broadcast %184 : f32 to vector<1x128xf32>
    %188 = vector.broadcast %183 : f32 to vector<1x128xf32>
    %189 = arith.select %186, %187, %188 : vector<1x128xi1>, vector<1x128xf32>
    %190 = math.log %177 : vector<1x128xf32>
    %cst_64 = arith.constant -1.000000e+02 : f32
    %191 = vector.broadcast %cst_64 : f32 to vector<1x128xf32>
    %192 = arith.maximumf %190, %191 : vector<1x128xf32>
    %cst_65 = arith.constant 1.000000e+00 : f32
    %193 = vector.broadcast %cst_65 : f32 to vector<1x128xf32>
    %194 = arith.subf %193, %177 : vector<1x128xf32>
    %195 = math.log %194 : vector<1x128xf32>
    %cst_66 = arith.constant -1.000000e+02 : f32
    %196 = vector.broadcast %cst_66 : f32 to vector<1x128xf32>
    %197 = arith.maximumf %195, %196 : vector<1x128xf32>
    %198 = arith.mulf %178, %192 : vector<1x128xf32>
    %cst_67 = arith.constant 1.000000e+00 : f32
    %199 = vector.broadcast %cst_67 : f32 to vector<1x128xf32>
    %200 = arith.subf %199, %178 : vector<1x128xf32>
    %201 = arith.mulf %200, %197 : vector<1x128xf32>
    %202 = arith.addf %198, %201 : vector<1x128xf32>
    %cst_68 = arith.constant 0.000000e+00 : f32
    %203 = vector.broadcast %cst_68 : f32 to vector<1x128xf32>
    %204 = arith.subf %203, %202 : vector<1x128xf32>
    %205 = arith.mulf %189, %204 : vector<1x128xf32>
    %206 = vector.shape_cast %205 : vector<1x128xf32> to vector<1x1x128xf32>
    %cst_69 = arith.constant dense<0.000000e+00> : vector<1xf32>
    %207 = vector.multi_reduction <add>, %206, %cst_69 [1, 2] : vector<1x1x128xf32> to vector<1xf32>
    %208 = vector.shape_cast %207 : vector<1xf32> to vector<1x1x1xf32>
    %209 = vector.extract %208[0, 0, 0] : f32 from vector<1x1x1xf32>
    %cst_70 = arith.constant 1.280000e+02 : f32
    %210 = arith.divf %209, %cst_70 : f32
    %cst_71 = arith.constant 5.000000e-01 : f32
    %211 = vector.broadcast %cst_71 : f32 to vector<1x128xf32>
    %212 = arith.cmpf oge, %177, %211 : vector<1x128xf32>
    %213 = arith.extui %212 : vector<1x128xi1> to vector<1x128xi32>
    %214 = arith.sitofp %213 : vector<1x128xi32> to vector<1x128xf32>
    %215 = arith.mulf %214, %178 : vector<1x128xf32>
    %216 = vector.shape_cast %215 : vector<1x128xf32> to vector<1x1x128xf32>
    %cst_72 = arith.constant dense<0.000000e+00> : vector<1xf32>
    %217 = vector.multi_reduction <add>, %216, %cst_72 [1, 2] : vector<1x1x128xf32> to vector<1xf32>
    %218 = vector.shape_cast %217 : vector<1xf32> to vector<1x1x1xf32>
    %219 = vector.extract %218[0, 0, 0] : f32 from vector<1x1x1xf32>
    %220 = vector.shape_cast %214 : vector<1x128xf32> to vector<1x1x128xf32>
    %cst_73 = arith.constant dense<0.000000e+00> : vector<1xf32>
    %221 = vector.multi_reduction <add>, %220, %cst_73 [1, 2] : vector<1x1x128xf32> to vector<1xf32>
    %222 = vector.shape_cast %221 : vector<1xf32> to vector<1x1x1xf32>
    %223 = vector.extract %222[0, 0, 0] : f32 from vector<1x1x1xf32>
    %cst_74 = arith.constant 0.000000e+00 : f32
    %224 = arith.cmpf ogt, %223, %cst_74 : f32
    %cst_75 = arith.constant 9.99999996E-13 : f32
    %225 = arith.maximumf %223, %cst_75 : f32
    %226 = arith.divf %219, %225 : f32
    %cst_76 = arith.constant 0.000000e+00 : f32
    %227 = arith.select %224, %226, %cst_76 : f32
    %cst_77 = arith.constant 0.000000e+00 : f32
    %228 = arith.cmpf ogt, %182, %cst_77 : f32
    %cst_78 = arith.constant 9.99999996E-13 : f32
    %229 = arith.maximumf %182, %cst_78 : f32
    %230 = arith.divf %219, %229 : f32
    %cst_79 = arith.constant 0.000000e+00 : f32
    %231 = arith.select %228, %230, %cst_79 : f32
    %c0_80 = arith.constant 0 : index
    %c0_81 = arith.constant 0 : index
    %232 = vector.load %arg8[%c0_80, %c0_81] : memref<40x3xf32, #tpu.memory_space<vmem>>, vector<40x3xf32>
    %c0_82 = arith.constant 0 : index
    %c0_83 = arith.constant 0 : index
    %233 = vector.load %arg9[%c0_82, %c0_83] : memref<3x40xf32, #tpu.memory_space<vmem>>, vector<3x40xf32>
    %234 = vector.extract_strided_slice %232 {offsets = [0, 0], sizes = [40, 1], strides = [1, 1]} : vector<40x3xf32> to vector<40x1xf32>
    %235 = vector.extract_strided_slice %233 {offsets = [0, 0], sizes = [1, 40], strides = [1, 1]} : vector<3x40xf32> to vector<1x40xf32>
    %236 = vector.broadcast %234 : vector<40x1xf32> to vector<40x40xf32>
    %237 = vector.broadcast %235 : vector<1x40xf32> to vector<40x40xf32>
    %238 = arith.subf %236, %237 : vector<40x40xf32>
    %239 = arith.mulf %238, %238 : vector<40x40xf32>
    %240 = vector.extract_strided_slice %232 {offsets = [0, 1], sizes = [40, 1], strides = [1, 1]} : vector<40x3xf32> to vector<40x1xf32>
    %241 = vector.extract_strided_slice %233 {offsets = [1, 0], sizes = [1, 40], strides = [1, 1]} : vector<3x40xf32> to vector<1x40xf32>
    %242 = vector.broadcast %240 : vector<40x1xf32> to vector<40x40xf32>
    %243 = vector.broadcast %241 : vector<1x40xf32> to vector<40x40xf32>
    %244 = arith.subf %242, %243 : vector<40x40xf32>
    %245 = arith.mulf %244, %244 : vector<40x40xf32>
    %246 = arith.addf %239, %245 : vector<40x40xf32>
    %247 = vector.extract_strided_slice %232 {offsets = [0, 2], sizes = [40, 1], strides = [1, 1]} : vector<40x3xf32> to vector<40x1xf32>
    %248 = vector.extract_strided_slice %233 {offsets = [2, 0], sizes = [1, 40], strides = [1, 1]} : vector<3x40xf32> to vector<1x40xf32>
    %249 = vector.broadcast %247 : vector<40x1xf32> to vector<40x40xf32>
    %250 = vector.broadcast %248 : vector<1x40xf32> to vector<40x40xf32>
    %251 = arith.subf %249, %250 : vector<40x40xf32>
    %252 = arith.mulf %251, %251 : vector<40x40xf32>
    %253 = arith.addf %246, %252 : vector<40x40xf32>
    %cst_84 = arith.constant 2.000000e+00 : f32
    %254 = vector.broadcast %cst_84 : f32 to vector<40x40xf32>
    %255 = arith.mulf %254, %4 : vector<40x40xf32>
    %cst_85 = arith.constant 2.000000e+00 : f32
    %256 = vector.broadcast %cst_85 : f32 to vector<40x40xf32>
    %257 = arith.subf %256, %255 : vector<40x40xf32>
    %cst_86 = arith.constant 0.000000e+00 : f32
    %258 = vector.broadcast %cst_86 : f32 to vector<40x40xf32>
    %259 = arith.maximumf %257, %258 : vector<40x40xf32>
    %260 = math.sqrt %259 : vector<40x40xf32>
    %cst_87 = arith.constant 2.500000e-03 : f32
    %261 = vector.broadcast %cst_87 : f32 to vector<40x40xf32>
    %262 = arith.cmpf olt, %253, %261 : vector<40x40xf32>
    %263 = arith.extui %262 : vector<40x40xi1> to vector<40x40xi32>
    %264 = arith.sitofp %263 : vector<40x40xi32> to vector<40x40xf32>
    %cst_88 = arith.constant dense<0.000000e+00> : vector<40xf32>
    %265 = vector.multi_reduction <add>, %264, %cst_88 [1] : vector<40x40xf32> to vector<40xf32>
    %266 = vector.shape_cast %265 : vector<40xf32> to vector<40x1xf32>
    %cst_89 = arith.constant dense<0.000000e+00> : vector<40xf32>
    %267 = vector.multi_reduction <add>, %264, %cst_89 [0] : vector<40x40xf32> to vector<40xf32>
    %268 = vector.shape_cast %267 : vector<40xf32> to vector<1x40xf32>
    %cst_90 = arith.constant 1.000000e-01 : f32
    %269 = vector.broadcast %cst_90 : f32 to vector<40x40xf32>
    %270 = arith.subf %260, %269 : vector<40x40xf32>
    %cst_91 = arith.constant 0.000000e+00 : f32
    %271 = vector.broadcast %cst_91 : f32 to vector<40x40xf32>
    %272 = arith.maximumf %270, %271 : vector<40x40xf32>
    %cst_92 = arith.constant 0.000000e+00 : f32
    %273 = vector.broadcast %cst_92 : f32 to vector<40x40xf32>
    %274 = arith.select %262, %272, %273 : vector<40x40xi1>, vector<40x40xf32>
    %cst_93 = arith.constant 1.000000e-01 : f32
    %275 = vector.broadcast %cst_93 : f32 to vector<40x40xf32>
    %276 = arith.subf %260, %275 : vector<40x40xf32>
    %cst_94 = arith.constant 1.600000e+01 : f32
    %277 = vector.broadcast %cst_94 : f32 to vector<40x40xf32>
    %278 = arith.mulf %277, %276 : vector<40x40xf32>
    %279 = arith.mulf %278, %274 : vector<40x40xf32>
    %cst_95 = arith.constant 8.000000e+01 : f32
    %280 = vector.broadcast %cst_95 : f32 to vector<40x40xf32>
    %281 = arith.minimumf %279, %280 : vector<40x40xf32>
    %282 = math.exp %281 : vector<40x40xf32>
    %cst_96 = arith.constant dense<0.000000e+00> : vector<40xf32>
    %283 = vector.multi_reduction <add>, %282, %cst_96 [1] : vector<40x40xf32> to vector<40xf32>
    %284 = vector.shape_cast %283 : vector<40xf32> to vector<40x1xf32>
    %cst_97 = arith.constant dense<0.000000e+00> : vector<40xf32>
    %285 = vector.multi_reduction <add>, %282, %cst_97 [0] : vector<40x40xf32> to vector<40xf32>
    %286 = vector.shape_cast %285 : vector<40xf32> to vector<1x40xf32>
    %cst_98 = arith.constant 0.00999999977 : f32
    %287 = vector.broadcast %cst_98 : f32 to vector<40x40xf32>
    %288 = arith.cmpf ogt, %253, %287 : vector<40x40xf32>
    %289 = arith.extui %288 : vector<40x40xi1> to vector<40x40xi32>
    %290 = arith.sitofp %289 : vector<40x40xi32> to vector<40x40xf32>
    %cst_99 = arith.constant dense<0.000000e+00> : vector<40xf32>
    %291 = vector.multi_reduction <add>, %290, %cst_99 [1] : vector<40x40xf32> to vector<40xf32>
    %292 = vector.shape_cast %291 : vector<40xf32> to vector<40x1xf32>
    %cst_100 = arith.constant dense<0.000000e+00> : vector<40xf32>
    %293 = vector.multi_reduction <add>, %290, %cst_100 [0] : vector<40x40xf32> to vector<40xf32>
    %294 = vector.shape_cast %293 : vector<40xf32> to vector<1x40xf32>
    %cst_101 = arith.constant 1.400000e+00 : f32
    %295 = vector.broadcast %cst_101 : f32 to vector<40x40xf32>
    %296 = arith.subf %295, %260 : vector<40x40xf32>
    %cst_102 = arith.constant 0.000000e+00 : f32
    %297 = vector.broadcast %cst_102 : f32 to vector<40x40xf32>
    %298 = arith.maximumf %296, %297 : vector<40x40xf32>
    %cst_103 = arith.constant 0.000000e+00 : f32
    %299 = vector.broadcast %cst_103 : f32 to vector<40x40xf32>
    %300 = arith.select %288, %298, %299 : vector<40x40xi1>, vector<40x40xf32>
    %cst_104 = arith.constant 1.400000e+00 : f32
    %301 = vector.broadcast %cst_104 : f32 to vector<40x40xf32>
    %302 = arith.subf %301, %260 : vector<40x40xf32>
    %cst_105 = arith.constant 1.600000e+01 : f32
    %303 = vector.broadcast %cst_105 : f32 to vector<40x40xf32>
    %304 = arith.mulf %303, %302 : vector<40x40xf32>
    %305 = arith.mulf %304, %300 : vector<40x40xf32>
    %cst_106 = arith.constant 8.000000e+01 : f32
    %306 = vector.broadcast %cst_106 : f32 to vector<40x40xf32>
    %307 = arith.minimumf %305, %306 : vector<40x40xf32>
    %308 = math.exp %307 : vector<40x40xf32>
    %cst_107 = arith.constant dense<0.000000e+00> : vector<40xf32>
    %309 = vector.multi_reduction <add>, %308, %cst_107 [1] : vector<40x40xf32> to vector<40xf32>
    %310 = vector.shape_cast %309 : vector<40xf32> to vector<40x1xf32>
    %cst_108 = arith.constant dense<0.000000e+00> : vector<40xf32>
    %311 = vector.multi_reduction <add>, %308, %cst_108 [0] : vector<40x40xf32> to vector<40xf32>
    %312 = vector.shape_cast %311 : vector<40xf32> to vector<1x40xf32>
    %cst_109 = arith.constant 0.000000e+00 : f32
    %313 = vector.broadcast %cst_109 : f32 to vector<40x1xf32>
    %314 = arith.cmpf ogt, %266, %313 : vector<40x1xf32>
    %cst_110 = arith.constant 0.000000e+00 : f32
    %315 = vector.broadcast %cst_110 : f32 to vector<40x1xf32>
    %316 = arith.cmpf ogt, %292, %315 : vector<40x1xf32>
    %317 = arith.andi %314, %316 : vector<40x1xi1>
    %cst_111 = arith.constant 0.000000e+00 : f32
    %318 = vector.broadcast %cst_111 : f32 to vector<1x40xf32>
    %319 = arith.cmpf ogt, %268, %318 : vector<1x40xf32>
    %cst_112 = arith.constant 0.000000e+00 : f32
    %320 = vector.broadcast %cst_112 : f32 to vector<1x40xf32>
    %321 = arith.cmpf ogt, %294, %320 : vector<1x40xf32>
    %322 = arith.andi %319, %321 : vector<1x40xi1>
    %323 = arith.extui %317 : vector<40x1xi1> to vector<40x1xi32>
    %324 = arith.sitofp %323 : vector<40x1xi32> to vector<40x1xf32>
    %325 = arith.extui %322 : vector<1x40xi1> to vector<1x40xi32>
    %326 = arith.sitofp %325 : vector<1x40xi32> to vector<1x40xf32>
    %327 = arith.mulf %284, %310 : vector<40x1xf32>
    %cst_113 = arith.constant 9.99999968E-21 : f32
    %328 = vector.broadcast %cst_113 : f32 to vector<40x1xf32>
    %329 = arith.select %317, %327, %328 : vector<40x1xi1>, vector<40x1xf32>
    %330 = arith.mulf %286, %312 : vector<1x40xf32>
    %cst_114 = arith.constant 9.99999968E-21 : f32
    %331 = vector.broadcast %cst_114 : f32 to vector<1x40xf32>
    %332 = arith.select %322, %330, %331 : vector<1x40xi1>, vector<1x40xf32>
    %333 = tpu.iota {dimensions = array<i32: 0>} : vector<40x40xi32>
    %334 = tpu.iota {dimensions = array<i32: 1>} : vector<40x40xi32>
    %335 = arith.cmpi eq, %333, %334 : vector<40x40xi32>
    %336 = vector.shape_cast %329 : vector<40x1xf32> to vector<40x1xf32>
    %337 = vector.broadcast %336 : vector<40x1xf32> to vector<40x40xf32>
    %cst_115 = arith.constant 0.000000e+00 : f32
    %338 = vector.broadcast %cst_115 : f32 to vector<40x40xf32>
    %339 = arith.select %335, %337, %338 : vector<40x40xi1>, vector<40x40xf32>
    %cst_116 = arith.constant dense<0.000000e+00> : vector<40xf32>
    %340 = vector.multi_reduction <add>, %339, %cst_116 [0] : vector<40x40xf32> to vector<40xf32>
    %341 = vector.shape_cast %340 : vector<40xf32> to vector<1x40xf32>
    %342 = math.log %341 : vector<1x40xf32>
    %cst_117 = arith.constant 0.000000e+00 : f32
    %343 = vector.broadcast %cst_117 : f32 to vector<1x40xf32>
    %344 = arith.maximumf %342, %343 : vector<1x40xf32>
    %345 = math.absf %342 : vector<1x40xf32>
    %cst_118 = arith.constant 0.000000e+00 : f32
    %346 = vector.broadcast %cst_118 : f32 to vector<1x40xf32>
    %347 = arith.subf %346, %345 : vector<1x40xf32>
    %348 = math.exp %347 : vector<1x40xf32>
    %349 = math.log1p %348 : vector<1x40xf32>
    %350 = arith.addf %344, %349 : vector<1x40xf32>
    %cst_119 = arith.constant 1.600000e+01 : f32
    %351 = vector.broadcast %cst_119 : f32 to vector<1x40xf32>
    %352 = arith.divf %350, %351 : vector<1x40xf32>
    %353 = math.log %332 : vector<1x40xf32>
    %cst_120 = arith.constant 0.000000e+00 : f32
    %354 = vector.broadcast %cst_120 : f32 to vector<1x40xf32>
    %355 = arith.maximumf %353, %354 : vector<1x40xf32>
    %356 = math.absf %353 : vector<1x40xf32>
    %cst_121 = arith.constant 0.000000e+00 : f32
    %357 = vector.broadcast %cst_121 : f32 to vector<1x40xf32>
    %358 = arith.subf %357, %356 : vector<1x40xf32>
    %359 = math.exp %358 : vector<1x40xf32>
    %360 = math.log1p %359 : vector<1x40xf32>
    %361 = arith.addf %355, %360 : vector<1x40xf32>
    %cst_122 = arith.constant 1.600000e+01 : f32
    %362 = vector.broadcast %cst_122 : f32 to vector<1x40xf32>
    %363 = arith.divf %361, %362 : vector<1x40xf32>
    %364 = vector.shape_cast %352 : vector<1x40xf32> to vector<1x1x40xf32>
    %cst_123 = arith.constant dense<0.000000e+00> : vector<1xf32>
    %365 = vector.multi_reduction <add>, %364, %cst_123 [1, 2] : vector<1x1x40xf32> to vector<1xf32>
    %366 = vector.shape_cast %365 : vector<1xf32> to vector<1x1x1xf32>
    %367 = vector.extract %366[0, 0, 0] : f32 from vector<1x1x1xf32>
    %368 = vector.shape_cast %324 : vector<40x1xf32> to vector<1x40x1xf32>
    %cst_124 = arith.constant dense<0.000000e+00> : vector<1xf32>
    %369 = vector.multi_reduction <add>, %368, %cst_124 [1, 2] : vector<1x40x1xf32> to vector<1xf32>
    %370 = vector.shape_cast %369 : vector<1xf32> to vector<1x1x1xf32>
    %371 = vector.extract %370[0, 0, 0] : f32 from vector<1x1x1xf32>
    %cst_125 = arith.constant 1.000000e+00 : f32
    %372 = arith.maximumf %371, %cst_125 : f32
    %373 = arith.divf %367, %372 : f32
    %374 = vector.shape_cast %363 : vector<1x40xf32> to vector<1x1x40xf32>
    %cst_126 = arith.constant dense<0.000000e+00> : vector<1xf32>
    %375 = vector.multi_reduction <add>, %374, %cst_126 [1, 2] : vector<1x1x40xf32> to vector<1xf32>
    %376 = vector.shape_cast %375 : vector<1xf32> to vector<1x1x1xf32>
    %377 = vector.extract %376[0, 0, 0] : f32 from vector<1x1x1xf32>
    %378 = vector.shape_cast %326 : vector<1x40xf32> to vector<1x1x40xf32>
    %cst_127 = arith.constant dense<0.000000e+00> : vector<1xf32>
    %379 = vector.multi_reduction <add>, %378, %cst_127 [1, 2] : vector<1x1x40xf32> to vector<1xf32>
    %380 = vector.shape_cast %379 : vector<1xf32> to vector<1x1x1xf32>
    %381 = vector.extract %380[0, 0, 0] : f32 from vector<1x1x1xf32>
    %cst_128 = arith.constant 1.000000e+00 : f32
    %382 = arith.maximumf %381, %cst_128 : f32
    %383 = arith.divf %377, %382 : f32
    %384 = arith.addf %373, %383 : f32
    %cst_129 = arith.constant 5.000000e-01 : f32
    %385 = arith.mulf %cst_129, %384 : f32
    %386 = tpu.iota {dimensions = array<i32: 1>} : vector<40x40xi32>
    %387 = arith.sitofp %386 : vector<40x40xi32> to vector<40x40xf32>
    %cst_130 = arith.constant dense<0x7F800000> : vector<40xf32>
    %388 = vector.multi_reduction <minimumf>, %260, %cst_130 [1] : vector<40x40xf32> to vector<40xf32>
    %389 = vector.shape_cast %388 : vector<40xf32> to vector<40x1xf32>
    %390 = vector.broadcast %389 : vector<40x1xf32> to vector<40x40xf32>
    %391 = arith.cmpf oeq, %260, %390 : vector<40x40xf32>
    %cst_131 = arith.constant 4.000000e+01 : f32
    %392 = vector.broadcast %cst_131 : f32 to vector<40x40xf32>
    %393 = arith.select %391, %387, %392 : vector<40x40xi1>, vector<40x40xf32>
    %cst_132 = arith.constant dense<0x7F800000> : vector<40xf32>
    %394 = vector.multi_reduction <minimumf>, %393, %cst_132 [1] : vector<40x40xf32> to vector<40xf32>
    %395 = vector.shape_cast %394 : vector<40xf32> to vector<40x1xf32>
    %396 = vector.broadcast %395 : vector<40x1xf32> to vector<40x40xf32>
    %397 = arith.cmpf oeq, %387, %396 : vector<40x40xf32>
    %cst_133 = arith.constant 0.000000e+00 : f32
    %398 = vector.broadcast %cst_133 : f32 to vector<40x40xf32>
    %399 = arith.select %397, %253, %398 : vector<40x40xi1>, vector<40x40xf32>
    %cst_134 = arith.constant dense<0.000000e+00> : vector<40xf32>
    %400 = vector.multi_reduction <add>, %399, %cst_134 [1] : vector<40x40xf32> to vector<40xf32>
    %401 = vector.shape_cast %400 : vector<40xf32> to vector<40x1xf32>
    %cst_135 = arith.constant 0.000000e+00 : f32
    %402 = vector.broadcast %cst_135 : f32 to vector<40x1xf32>
    %403 = arith.cmpf ogt, %266, %402 : vector<40x1xf32>
    %404 = arith.extui %403 : vector<40x1xi1> to vector<40x1xi32>
    %405 = arith.sitofp %404 : vector<40x1xi32> to vector<40x1xf32>
    %406 = vector.shape_cast %405 : vector<40x1xf32> to vector<1x40x1xf32>
    %cst_136 = arith.constant dense<0.000000e+00> : vector<1xf32>
    %407 = vector.multi_reduction <add>, %406, %cst_136 [1, 2] : vector<1x40x1xf32> to vector<1xf32>
    %408 = vector.shape_cast %407 : vector<1xf32> to vector<1x1x1xf32>
    %409 = vector.extract %408[0, 0, 0] : f32 from vector<1x1x1xf32>
    %cst_137 = arith.constant 9.99999996E-13 : f32
    %410 = arith.addf %409, %cst_137 : f32
    %cst_138 = arith.constant 2.500000e-03 : f32
    %411 = vector.broadcast %cst_138 : f32 to vector<40x1xf32>
    %412 = arith.cmpf olt, %401, %411 : vector<40x1xf32>
    %413 = arith.extui %412 : vector<40x1xi1> to vector<40x1xi32>
    %414 = arith.sitofp %413 : vector<40x1xi32> to vector<40x1xf32>
    %415 = arith.mulf %414, %405 : vector<40x1xf32>
    %416 = vector.shape_cast %415 : vector<40x1xf32> to vector<1x40x1xf32>
    %cst_139 = arith.constant dense<0.000000e+00> : vector<1xf32>
    %417 = vector.multi_reduction <add>, %416, %cst_139 [1, 2] : vector<1x40x1xf32> to vector<1xf32>
    %418 = vector.shape_cast %417 : vector<1xf32> to vector<1x1x1xf32>
    %419 = vector.extract %418[0, 0, 0] : f32 from vector<1x1x1xf32>
    %420 = arith.divf %419, %410 : f32
    %c0_140 = arith.constant 0 : index
    %421 = memref.load %arg10[%c0_140] : memref<9xf32, #tpu.memory_space<smem>>
    memref.store %140, %arg10[%c0_140] : memref<9xf32, #tpu.memory_space<smem>>
    %c1 = arith.constant 1 : index
    %422 = memref.load %arg10[%c1] : memref<9xf32, #tpu.memory_space<smem>>
    memref.store %172, %arg10[%c1] : memref<9xf32, #tpu.memory_space<smem>>
    %c2 = arith.constant 2 : index
    %423 = memref.load %arg10[%c2] : memref<9xf32, #tpu.memory_space<smem>>
    memref.store %176, %arg10[%c2] : memref<9xf32, #tpu.memory_space<smem>>
    %c3 = arith.constant 3 : index
    %424 = memref.load %arg10[%c3] : memref<9xf32, #tpu.memory_space<smem>>
    memref.store %210, %arg10[%c3] : memref<9xf32, #tpu.memory_space<smem>>
    %c4 = arith.constant 4 : index
    %425 = memref.load %arg10[%c4] : memref<9xf32, #tpu.memory_space<smem>>
    memref.store %227, %arg10[%c4] : memref<9xf32, #tpu.memory_space<smem>>
    %c5 = arith.constant 5 : index
    %426 = memref.load %arg10[%c5] : memref<9xf32, #tpu.memory_space<smem>>
    memref.store %231, %arg10[%c5] : memref<9xf32, #tpu.memory_space<smem>>
    %c6 = arith.constant 6 : index
    %427 = memref.load %arg10[%c6] : memref<9xf32, #tpu.memory_space<smem>>
    memref.store %385, %arg10[%c6] : memref<9xf32, #tpu.memory_space<smem>>
    %c7 = arith.constant 7 : index
    %428 = memref.load %arg10[%c7] : memref<9xf32, #tpu.memory_space<smem>>
    memref.store %420, %arg10[%c7] : memref<9xf32, #tpu.memory_space<smem>>
    %cst_141 = arith.constant 1.000000e+00 : f32
    %429 = arith.mulf %385, %cst_141 : f32
    %cst_142 = arith.constant 1.000000e+00 : f32
    %430 = arith.mulf %210, %cst_142 : f32
    %431 = arith.addf %429, %430 : f32
    %cst_143 = arith.constant 1.000000e+00 : f32
    %432 = arith.mulf %140, %cst_143 : f32
    %433 = arith.addf %431, %432 : f32
    %c8 = arith.constant 8 : index
    %434 = memref.load %arg10[%c8] : memref<9xf32, #tpu.memory_space<smem>>
    memref.store %433, %arg10[%c8] : memref<9xf32, #tpu.memory_space<smem>>
    return
  }
}

</mosaic_0001>

<llo_original>
// kernel: _device_forward.1
$region0: #{_device_forward.1}
  #allocation0 [shape = 'u32[]', space=smem, size = 0x4, offset = 0x4, fixed_abs, tag = 'smem constant byte address 0x4 - core index']
  #allocation1 [shape = 'u32[144,128]{1,0:T(1,128)}', space=vmem, size = 0x12000, scoped, tag = 'internal scratch']
  %s0 = inlined_call_operand.vmem [shape: f32[80,32], index: 0, kind: input, shape index: {}]
  %s1 = inlined_call_operand.vmem [shape: f32[32,168], index: 1, kind: input, shape index: {}]
  %s2 = inlined_call_operand.vmem [shape: f32[40,3], index: 2, kind: input, shape index: {}]
  %s3 = inlined_call_operand.vmem [shape: f32[3,40], index: 3, kind: input, shape index: {}]
  %s4 = inlined_call_operand.vmem [shape: f32[1,40], index: 4, kind: input, shape index: {}]
  %s5 = inlined_call_operand.vmem [shape: f32[1,40], index: 5, kind: input, shape index: {}]
  %s6 = inlined_call_operand.vmem [shape: f32[1,128], index: 6, kind: input, shape index: {}]
  %s7 = inlined_call_operand.vmem [shape: f32[1,128], index: 7, kind: input, shape index: {}]
  %s8 = inlined_call_operand.vmem [shape: f32[40,3], index: 8, kind: input, shape index: {}]
  %s9 = inlined_call_operand.vmem [shape: f32[3,40], index: 9, kind: input, shape index: {}]
  %s10 = inlined_call_operand.hbm [shape: f32[9], index: 10, kind: output, shape index: {}]
  %s11 = sld [smem:[#allocation0]]
  $region50: #{_device_forward.1} parent=0
    _
  %s13 = ssub.s32 1, %s11
  %s14 = scalar_select 0, %s13, %s11
  $region1: #{_device_forward.1} parent=0
    #allocation2 [shape = 'u8[512]{0}', space=smem, size = 0x200, scoped, tag = 'output window, operand 0, single buffered']
    #allocation3 [shape = 's32[1]{0}', space=sflag, size = 0x4, scoped, tag = 'scoped memory for _device_forward.1']
    %15 = vsyncpa [#allocation3], 0
    // Predicated region
    $region2: #{_device_forward.1} parent=1 // pred_check
      _
    $region3: #{_device_forward.1} parent=1 // pred_check_branch
      %17 = sbr.rel (0) target = $region5
    $region4: #{_device_forward.1} parent=1 // pred_region
      _
    $region5: #{_device_forward.1} parent=1 // pred_fallthru
      _
    // Predicated region
    $region6: #{_device_forward.1} parent=1 // pred_check
      _
    $region7: #{_device_forward.1} parent=1 // pred_check_branch
      %19 = sbr.rel (0) target = $region9
    $region8: #{_device_forward.1} parent=1 // pred_region
      _
    $region9: #{_device_forward.1} parent=1 // pred_fallthru
      _
    // Predicated region
    $region10: #{_device_forward.1} parent=1 // pred_check
      _
    $region11: #{_device_forward.1} parent=1 // pred_check_branch
      %21 = sbr.rel (0) target = $region13
    $region12: #{_device_forward.1} parent=1 // pred_region
      _
    $region13: #{_device_forward.1} parent=1 // pred_fallthru
      _
    // Predicated region
    $region14: #{_device_forward.1} parent=1 // pred_check
      _
    $region15: #{_device_forward.1} parent=1 // pred_check_branch
      %23 = sbr.rel (0) target = $region17
    $region16: #{_device_forward.1} parent=1 // pred_region
      _
    $region17: #{_device_forward.1} parent=1 // pred_fallthru
      _
    // Predicated region
    $region18: #{_device_forward.1} parent=1 // pred_check
      _
    $region19: #{_device_forward.1} parent=1 // pred_check_branch
      %25 = sbr.rel (0) target = $region21
    $region20: #{_device_forward.1} parent=1 // pred_region
      _
    $region21: #{_device_forward.1} parent=1 // pred_fallthru
      _
    // Predicated region
    $region22: #{_device_forward.1} parent=1 // pred_check
      _
    $region23: #{_device_forward.1} parent=1 // pred_check_branch
      %27 = sbr.rel (0) target = $region25
    $region24: #{_device_forward.1} parent=1 // pred_region
      _
    $region25: #{_device_forward.1} parent=1 // pred_fallthru
      _
    // Predicated region
    $region26: #{_device_forward.1} parent=1 // pred_check
      _
    $region27: #{_device_forward.1} parent=1 // pred_check_branch
      %29 = sbr.rel (0) target = $region29
    $region28: #{_device_forward.1} parent=1 // pred_region
      _
    $region29: #{_device_forward.1} parent=1 // pred_fallthru
      _
    // Predicated region
    $region30: #{_device_forward.1} parent=1 // pred_check
      _
    $region31: #{_device_forward.1} parent=1 // pred_check_branch
      %31 = sbr.rel (0) target = $region33
    $region32: #{_device_forward.1} parent=1 // pred_region
      _
    $region33: #{_device_forward.1} parent=1 // pred_fallthru
      _
    // Predicated region
    $region34: #{_device_forward.1} parent=1 // pred_check
      _
    $region35: #{_device_forward.1} parent=1 // pred_check_branch
      %33 = sbr.rel (0) target = $region37
    $region36: #{_device_forward.1} parent=1 // pred_region
      _
    $region37: #{_device_forward.1} parent=1 // pred_fallthru
      _
    // Predicated region
    $region38: #{_device_forward.1} parent=1 // pred_check
      _
    $region39: #{_device_forward.1} parent=1 // pred_check_branch
      %35 = sbr.rel (0) target = $region41
    $region40: #{_device_forward.1} parent=1 // pred_region
      _
    $region41: #{_device_forward.1} parent=1 // pred_fallthru
      _
    %v36 = vld [vmem:[%s0] sm:$0xff]
    %v37 = vld [vmem:[%s0 + $0x8] sm:$0xff]
    %v38 = vld [vmem:[%s0 + $0x10] sm:$0xff]
    %v39 = vld [vmem:[%s0 + $0x18] sm:$0xff]
    %v40 = vld [vmem:[%s0 + $0x20] sm:$0xff]
    %v41 = vld [vmem:[%s0 + $0x28] sm:$0xff]
    %v42 = vld [vmem:[%s0 + $0x30] sm:$0xff]
    %v43 = vld [vmem:[%s0 + $0x38] sm:$0xff]
    %v44 = vld [vmem:[%s0 + $0x40] sm:$0xff]
    %v45 = vld [vmem:[%s0 + $0x48] sm:$0xff]
    %v46 = vld [vmem:[%s1] sm:$0xff]
    %v47 = vld [vmem:[%s1 + $0x8] sm:$0xff]
    %v48 = vld [vmem:[%s1 + $0x10] sm:$0xff]
    %v49 = vld [vmem:[%s1 + $0x18] sm:$0xff]
    %v50 = vld [vmem:[%s1 + $0x20] sm:$0xff]
    %v51 = vld [vmem:[%s1 + $0x28] sm:$0xff]
    %v52 = vld [vmem:[%s1 + $0x30] sm:$0xff]
    %v53 = vld [vmem:[%s1 + $0x38] sm:$0xff]
    %vm54 = vcmask 261120
    %v56 = vsel %vm54, %v36, 0
    %v59 = vsel %vm54, %v37, 0
    %v62 = vsel %vm54, %v38, 0
    %v65 = vsel %vm54, %v39, 0
    %v68 = vsel %vm54, %v40, 0
    %v71 = vsel %vm54, %v41, 0
    %v74 = vsel %vm54, %v42, 0
    %v77 = vsel %vm54, %v43, 0
    %v80 = vsel %vm54, %v44, 0
    %v83 = vsel %vm54, %v45, 0
    %85 = vmatprep.subr.mxu0 %v47
    %86 = vmatpush1.msra.mxu0 %v46
    %87 = vmatprep.subr.mxu0 %v49
    %88 = vmatpush1.msra.mxu0 %v48
    %89 = vmatprep.subr.mxu0 %v51
    %90 = vmatpush1.msra.mxu0 %v50
    %91 = vmatprep.subr.mxu0 %v53
    %92 = vmatpush1.msra.mxu0 %v52
    %93 = vmatprep.subr.mxu0 0.0
    %94 = vmatpush1.msra.mxu0 0.0
    %95 = vmatprep.subr.mxu0 0.0
    %96 = vmatpush1.msra.mxu0 0.0
    %97 = vmatprep.subr.mxu0 0.0
    %98 = vmatpush1.msra.mxu0 0.0
    %99 = vmatprep.subr.mxu0 0.0
    %100 = vmatpush1.msra.mxu0 0.0
    %101 = vmatprep.subr.mxu0 0.0
    %102 = vmatpush1.msra.mxu0 0.0
    %103 = vmatprep.subr.mxu0 0.0
    %104 = vmatpush1.msra.mxu0 0.0
    %105 = vmatprep.subr.mxu0 0.0
    %106 = vmatpush1.msra.mxu0 0.0
    %107 = vmatprep.subr.mxu0 0.0
    %108 = vmatpush1.msra.mxu0 0.0
    %109 = vmatprep.subr.mxu0 0.0
    %110 = vmatpush1.msra.mxu0 0.0
    %111 = vmatprep.subr.mxu0 0.0
    %112 = vmatpush1.msra.mxu0 0.0
    %113 = vmatprep.subr.mxu0 0.0
    %114 = vmatpush1.msra.mxu0 0.0
    %115 = vmatprep.subr.mxu0 0.0
    %116 = vmatpush1.msra.mxu0 0.0
    %117 = vmatprep.subr.mxu0 0.0
    %118 = vmatpush1.msra.mxu0 0.0
    %119 = vmatprep.subr.mxu0 0.0
    %120 = vmatpush1.msra.mxu0 0.0
    %121 = vmatprep.subr.mxu0 0.0
    %122 = vmatpush1.msra.mxu0 0.0
    %123 = vmatprep.subr.mxu0 0.0
    %124 = vmatpush1.msra.mxu0 0.0
    %125 = vmatprep.subr.mxu0 0.0
    %126 = vmatpush1.msra.mxu0 0.0
    %127 = vmatprep.subr.mxu0 0.0
    %128 = vmatpush1.msra.mxu0 0.0
    %129 = vmatprep.subr.mxu0 0.0
    %130 = vmatpush1.msra.mxu0 0.0
    %131 = vmatprep.subr.mxu0 0.0
    %132 = vmatpush1.msra.mxu0 0.0
    %133 = vmatprep.subr.mxu0 0.0
    %134 = vmatpush1.msra.mxu0 0.0
    %135 = vmatprep.subr.mxu0 0.0
    %136 = vmatpush1.msra.mxu0 0.0
    %137 = vmatprep.subr.mxu0 0.0
    %138 = vmatpush1.msra.mxu0 0.0
    %139 = vmatprep.subr.mxu0 0.0
    %140 = vmatpush1.msra.mxu0 0.0
    %141 = vmatprep.subr.mxu0 0.0
    %142 = vmatpush1.msra.mxu0 0.0
    %143 = vmatprep.subr.mxu0 0.0
    %144 = vmatpush1.msra.mxu0 0.0
    %145 = vmatprep.subr.mxu0 0.0
    %146 = vmatpush1.msra.mxu0 0.0
    %147 = vmatprep.subr.mxu0 0.0
    %148 = vmatpush1.msra.mxu0 0.0
    %149 = vmatprep.mubr.f32.mxu0 0.0
    %150 = vmatmul.mubr.f32.gmra.mrb[0].mxu0 %v56
    %v151 = vpop.f32.mrb[0].mxu0
    %v152 = vadd.f32 0.0, %v151
    %v153 = vpop.f32.mrb[0].mxu0
    %154 = vmatprep.mubr.f32.mxu0 0.0
    %155 = vmatmul.mubr.f32.gmra.mrb[0].mxu0 %v59
    %v156 = vpop.f32.mrb[0].mxu0
    %v157 = vadd.f32 0.0, %v156
    %v158 = vpop.f32.mrb[0].mxu0
    %159 = vmatprep.mubr.f32.mxu0 0.0
    %160 = vmatmul.mubr.f32.gmra.mrb[0].mxu0 %v62
    %v161 = vpop.f32.mrb[0].mxu0
    %v162 = vadd.f32 0.0, %v161
    %v163 = vpop.f32.mrb[0].mxu0
    %164 = vmatprep.mubr.f32.mxu0 0.0
    %165 = vmatmul.mubr.f32.gmra.mrb[0].mxu0 %v65
    %v166 = vpop.f32.mrb[0].mxu0
    %v167 = vadd.f32 0.0, %v166
    %v168 = vpop.f32.mrb[0].mxu0
    %169 = vmatprep.mubr.f32.mxu0 0.0
    %170 = vmatmul.mubr.f32.gmra.mrb[0].mxu0 %v68
    %v171 = vpop.f32.mrb[0].mxu0
    %v172 = vadd.f32 0.0, %v171
    %v173 = vpop.f32.mrb[0].mxu0
    %174 = vmatprep.mubr.f32.mxu0 0.0
    %175 = vmatmul.mubr.f32.gmra.mrb[0].mxu0 %v71
    %v176 = vpop.f32.mrb[0].mxu0
    %v177 = vpop.f32.mrb[0].mxu0
    %v178 = vadd.f32 0.0, %v177
    %179 = vmatprep.mubr.f32.mxu0 0.0
    %180 = vmatmul.mubr.f32.gmra.mrb[0].mxu0 %v74
    %v181 = vpop.f32.mrb[0].mxu0
    %v182 = vpop.f32.mrb[0].mxu0
    %v183 = vadd.f32 0.0, %v182
    %184 = vmatprep.mubr.f32.mxu0 0.0
    %185 = vmatmul.mubr.f32.gmra.mrb[0].mxu0 %v77
    %v186 = vpop.f32.mrb[0].mxu0
    %v187 = vpop.f32.mrb[0].mxu0
    %v188 = vadd.f32 0.0, %v187
    %189 = vmatprep.mubr.f32.mxu0 0.0
    %190 = vmatmul.mubr.f32.gmra.mrb[0].mxu0 %v80
    %v191 = vpop.f32.mrb[0].mxu0
    %v192 = vpop.f32.mrb[0].mxu0
    %v193 = vadd.f32 0.0, %v192
    %194 = vmatprep.mubr.f32.mxu0 0.0
    %195 = vmatmul.mubr.f32.gmra.mrb[0].mxu0 %v83
    %v196 = vpop.f32.mrb[0].mxu0
    %v197 = vpop.f32.mrb[0].mxu0
    %v198 = vadd.f32 0.0, %v197
    %199 = vdwg.mxu0
    %v200 = vld [vmem:[%s2] sm:$0xff]
    %v201 = vld [vmem:[%s2 + $0x8] sm:$0xff]
    %v202 = vld [vmem:[%s2 + $0x10] sm:$0xff]
    %v203 = vld [vmem:[%s2 + $0x18] sm:$0xff]
    %v204 = vld [vmem:[%s2 + $0x20] sm:$0xff]
    %v205 = vld [vmem:[%s3] sm:$0x7]
    %207 = vset.pattern.permute.xlu0 0
    %208 = vperm.xlu0 %207, %v200
    %v209 = vpop.permute.xlu0 %208
    %212 = vset.pattern.permute.xlu0 0
    %213 = vperm.xlu0 %212, %v201
    %v214 = vpop.permute.xlu0 %213
    %217 = vset.pattern.permute.xlu0 0
    %218 = vperm.xlu0 %217, %v202
    %v219 = vpop.permute.xlu0 %218
    %222 = vset.pattern.permute.xlu0 0
    %223 = vperm.xlu0 %222, %v203
    %v224 = vpop.permute.xlu0 %223
    %227 = vset.pattern.permute.xlu0 0
    %228 = vperm.xlu0 %227, %v204
    %v229 = vpop.permute.xlu0 %228
    %v231 = vlaneseq
    %v232 = vshrl.u32 %v231, 7
    %v233 = vsub.s32 0, %v232
    %v234 = vrot.slane %v205, %v233
    %v235 = vsub.f32 %v209, %v234
    %v236 = vsub.f32 %v214, %v234
    %v237 = vsub.f32 %v219, %v234
    %v238 = vsub.f32 %v224, %v234
    %v239 = vsub.f32 %v229, %v234
    %v240 = vmul.f32 %v235, %v235
    %v241 = vmul.f32 %v236, %v236
    %v242 = vmul.f32 %v237, %v237
    %v243 = vmul.f32 %v238, %v238
    %v244 = vmul.f32 %v239, %v239
    %245 = vset.pattern.permute.xlu0 1
    %246 = vperm.xlu0 %245, %v200
    %v247 = vpop.permute.xlu0 %246
    %249 = vset.pattern.permute.xlu0 1
    %250 = vperm.xlu0 %249, %v201
    %v251 = vpop.permute.xlu0 %250
    %253 = vset.pattern.permute.xlu0 1
    %254 = vperm.xlu0 %253, %v202
    %v255 = vpop.permute.xlu0 %254
    %257 = vset.pattern.permute.xlu0 1
    %258 = vperm.xlu0 %257, %v203
    %v259 = vpop.permute.xlu0 %258
    %261 = vset.pattern.permute.xlu0 1
    %262 = vperm.xlu0 %261, %v204
    %v263 = vpop.permute.xlu0 %262
    %v265 = vlaneseq
    %v266 = vshrl.u32 %v265, 7
    %v267 = vsub.s32 1, %v266
    %v268 = vrot.slane %v205, %v267
    %v269 = vsub.f32 %v247, %v268
    %v270 = vsub.f32 %v251, %v268
    %v271 = vsub.f32 %v255, %v268
    %v272 = vsub.f32 %v259, %v268
    %v273 = vsub.f32 %v263, %v268
    %v274 = vmul.f32 %v269, %v269
    %v275 = vmul.f32 %v270, %v270
    %v276 = vmul.f32 %v271, %v271
    %v277 = vmul.f32 %v272, %v272
    %v278 = vmul.f32 %v273, %v273
    %v279 = vadd.f32 %v240, %v274
    %v280 = vadd.f32 %v241, %v275
    %v281 = vadd.f32 %v242, %v276
    %v282 = vadd.f32 %v243, %v277
    %v283 = vadd.f32 %v244, %v278
    %284 = vset.pattern.permute.xlu0 2
    %285 = vperm.xlu0 %284, %v200
    %v286 = vpop.permute.xlu0 %285
    %288 = vset.pattern.permute.xlu0 2
    %289 = vperm.xlu0 %288, %v201
    %v290 = vpop.permute.xlu0 %289
    %292 = vset.pattern.permute.xlu0 2
    %293 = vperm.xlu0 %292, %v202
    %v294 = vpop.permute.xlu0 %293
    %296 = vset.pattern.permute.xlu0 2
    %297 = vperm.xlu0 %296, %v203
    %v298 = vpop.permute.xlu0 %297
    %300 = vset.pattern.permute.xlu0 2
    %301 = vperm.xlu0 %300, %v204
    %v302 = vpop.permute.xlu0 %301
    %v304 = vlaneseq
    %v305 = vshrl.u32 %v304, 7
    %v306 = vsub.s32 2, %v305
    %v307 = vrot.slane %v205, %v306
    %v308 = vsub.f32 %v286, %v307
    %v309 = vsub.f32 %v290, %v307
    %v310 = vsub.f32 %v294, %v307
    %v311 = vsub.f32 %v298, %v307
    %v312 = vsub.f32 %v302, %v307
    %v313 = vmul.f32 %v308, %v308
    %v314 = vmul.f32 %v309, %v309
    %v315 = vmul.f32 %v310, %v310
    %v316 = vmul.f32 %v311, %v311
    %v317 = vmul.f32 %v312, %v312
    %v318 = vadd.f32 %v279, %v313
    %v319 = vadd.f32 %v280, %v314
    %v320 = vadd.f32 %v281, %v315
    %v321 = vadd.f32 %v282, %v316
    %v322 = vadd.f32 %v283, %v317
    %v323 = vlaneseq
    %v324 = vand.u32 %v323, 127
    %v325 = vcvt.s32.f32 %v324
    %v326 = vlaneseq
    %v327 = vshrl.u32 %v326, 7
    %v328 = vadd.s32 %v327, 8
    %v329 = vadd.s32 %v327, 16
    %v330 = vadd.s32 %v327, 24
    %v331 = vadd.s32 %v327, 32
    %v332 = vcvt.s32.f32 %v327
    %v333 = vcvt.s32.f32 %v328
    %v334 = vcvt.s32.f32 %v329
    %v335 = vcvt.s32.f32 %v330
    %v336 = vcvt.s32.f32 %v331
    %vm337 = vcmask 326656
    %v338 = vsel %vm337, %v152, -inf
    %339 = vmax.xlane.f32.xlu0 %v338
    %v340 = vpop.xlane.xlu0 %339
    %v341 = vsel %vm337, %v157, -inf
    %342 = vmax.xlane.f32.xlu0 %v341
    %v343 = vpop.xlane.xlu0 %342
    %v344 = vsel %vm337, %v162, -inf
    %345 = vmax.xlane.f32.xlu0 %v344
    %v346 = vpop.xlane.xlu0 %345
    %v347 = vsel %vm337, %v167, -inf
    %348 = vmax.xlane.f32.xlu0 %v347
    %v349 = vpop.xlane.xlu0 %348
    %v350 = vsel %vm337, %v172, -inf
    %351 = vmax.xlane.f32.xlu0 %v350
    %v352 = vpop.xlane.xlu0 %351
    %vm353 = vcmp.eq.f32.partialorder %v152, %v340
    %vm354 = vcmp.eq.f32.partialorder %v157, %v343
    %vm355 = vcmp.eq.f32.partialorder %v162, %v346
    %vm356 = vcmp.eq.f32.partialorder %v167, %v349
    %vm357 = vcmp.eq.f32.partialorder %v172, %v352
    %v358 = vsel %vm353, %v325, 40.0
    %v359 = vsel %vm354, %v325, 40.0
    %v360 = vsel %vm355, %v325, 40.0
    %v361 = vsel %vm356, %v325, 40.0
    %v362 = vsel %vm357, %v325, 40.0
    %v363 = vsel %vm337, %v358, inf
    %364 = vmin.xlane.f32.xlu0 %v363
    %v365 = vpop.xlane.xlu0 %364
    %v366 = vsel %vm337, %v359, inf
    %367 = vmin.xlane.f32.xlu0 %v366
    %v368 = vpop.xlane.xlu0 %367
    %v369 = vsel %vm337, %v360, inf
    %370 = vmin.xlane.f32.xlu0 %v369
    %v371 = vpop.xlane.xlu0 %370
    %v372 = vsel %vm337, %v361, inf
    %373 = vmin.xlane.f32.xlu0 %v372
    %v374 = vpop.xlane.xlu0 %373
    %v375 = vsel %vm337, %v362, inf
    %376 = vmin.xlane.f32.xlu0 %v375
    %v377 = vpop.xlane.xlu0 %376
    %vm378 = vcmp.eq.f32.partialorder %v325, %v365
    %vm379 = vcmp.eq.f32.partialorder %v325, %v368
    %vm380 = vcmp.eq.f32.partialorder %v325, %v371
    %vm381 = vcmp.eq.f32.partialorder %v325, %v374
    %vm382 = vcmp.eq.f32.partialorder %v325, %v377
    %v383 = vsel %vm378, %v318, 0.0
    %v384 = vsel %vm379, %v319, 0.0
    %v385 = vsel %vm380, %v320, 0.0
    %v386 = vsel %vm381, %v321, 0.0
    %v387 = vsel %vm382, %v322, 0.0
    %v388 = vsel %vm337, %v383, 0.0
    %389 = vadd.xlane.f32.xlu0 %v388
    %v390 = vpop.xlane.xlu0 %389
    %v391 = vsel %vm337, %v384, 0.0
    %392 = vadd.xlane.f32.xlu0 %v391
    %v393 = vpop.xlane.xlu0 %392
    %v394 = vsel %vm337, %v385, 0.0
    %395 = vadd.xlane.f32.xlu0 %v394
    %v396 = vpop.xlane.xlu0 %395
    %v397 = vsel %vm337, %v386, 0.0
    %398 = vadd.xlane.f32.xlu0 %v397
    %v399 = vpop.xlane.xlu0 %398
    %v400 = vsel %vm337, %v387, 0.0
    %401 = vadd.xlane.f32.xlu0 %v400
    %v402 = vpop.xlane.xlu0 %401
    %vm403 = vcmp.eq.s32.totalorder %v327, %v324
    %vm404 = vcmp.eq.s32.totalorder %v328, %v324
    %vm405 = vcmp.eq.s32.totalorder %v329, %v324
    %vm406 = vcmp.eq.s32.totalorder %v330, %v324
    %vm407 = vcmp.eq.s32.totalorder %v331, %v324
    %v408 = vsel %vm403, %v390, 0.0
    %v409 = vsel %vm404, %v393, 0.0
    %v410 = vsel %vm405, %v396, 0.0
    %v411 = vsel %vm406, %v399, 0.0
    %v412 = vsel %vm407, %v402, 0.0
    %v413 = vsel %vm337, %v408, 0.0
    %v414 = vsel %vm337, %v409, 0.0
    %v415 = vadd.f32 %v413, %v414
    %v416 = vsel %vm337, %v410, 0.0
    %v417 = vadd.f32 %v415, %v416
    %v418 = vsel %vm337, %v411, 0.0
    %v419 = vadd.f32 %v417, %v418
    %v420 = vsel %vm337, %v412, 0.0
    %v421 = vadd.f32 %v419, %v420
    %v422 = vrot.slane %v421, 4
    %v423 = vadd.f32 %v421, %v422
    %v424 = vrot.slane %v423, 2
    %v425 = vadd.f32 %v423, %v424
    %v426 = vrot.slane %v425, 1
    %v427 = vadd.f32 %v425, %v426
    %v428 = vmax.f32 %v338, %v350
    %v429 = vmax.f32 %v428, %v341
    %v430 = vmax.f32 %v344, %v347
    %v431 = vmax.f32 %v429, %v430
    %v432 = vrot.slane %v431, 4
    %v433 = vmax.f32 %v431, %v432
    %v434 = vrot.slane %v433, 2
    %v435 = vmax.f32 %v433, %v434
    %v436 = vrot.slane %v435, 1
    %v437 = vmax.f32 %v435, %v436
    %vm438 = vcmp.eq.f32.partialorder %v152, %v437
    %vm439 = vcmp.eq.f32.partialorder %v157, %v437
    %vm440 = vcmp.eq.f32.partialorder %v162, %v437
    %vm441 = vcmp.eq.f32.partialorder %v167, %v437
    %vm442 = vcmp.eq.f32.partialorder %v172, %v437
    %v443 = vsel %vm438, %v332, 40.0
    %v444 = vsel %vm439, %v333, 40.0
    %v445 = vsel %vm440, %v334, 40.0
    %v446 = vsel %vm441, %v335, 40.0
    %v447 = vsel %vm442, %v336, 40.0
    %v448 = vsel %vm337, %v443, inf
    %v449 = vsel %vm337, %v444, inf
    %v450 = vsel %vm337, %v445, inf
    %v451 = vsel %vm337, %v446, inf
    %v452 = vsel %vm337, %v447, inf
    %v453 = vmin.f32 %v448, %v452
    %v454 = vmin.f32 %v453, %v449
    %v455 = vmin.f32 %v450, %v451
    %v456 = vmin.f32 %v454, %v455
    %v457 = vrot.slane %v456, 4
    %v458 = vmin.f32 %v456, %v457
    %v459 = vrot.slane %v458, 2
    %v460 = vmin.f32 %v458, %v459
    %v461 = vrot.slane %v460, 1
    %v462 = vmin.f32 %v460, %v461
    %vm463 = vcmp.eq.f32.partialorder %v332, %v462
    %vm464 = vcmp.eq.f32.partialorder %v333, %v462
    %vm465 = vcmp.eq.f32.partialorder %v334, %v462
    %vm466 = vcmp.eq.f32.partialorder %v335, %v462
    %vm467 = vcmp.eq.f32.partialorder %v336, %v462
    %v468 = vsel %vm463, %v318, 0.0
    %v469 = vsel %vm464, %v319, 0.0
    %v470 = vsel %vm465, %v320, 0.0
    %v471 = vsel %vm466, %v321, 0.0
    %v472 = vsel %vm467, %v322, 0.0
    %v473 = vsel %vm337, %v468, 0.0
    %v474 = vsel %vm337, %v469, 0.0
    %v475 = vadd.f32 %v473, %v474
    %v476 = vsel %vm337, %v470, 0.0
    %v477 = vadd.f32 %v475, %v476
    %v478 = vsel %vm337, %v471, 0.0
    %v479 = vadd.f32 %v477, %v478
    %v480 = vsel %vm337, %v472, 0.0
    %v481 = vadd.f32 %v479, %v480
    %v482 = vrot.slane %v481, 4
    %v483 = vadd.f32 %v481, %v482
    %v484 = vrot.slane %v483, 2
    %v485 = vadd.f32 %v483, %v484
    %v486 = vrot.slane %v485, 1
    %v487 = vadd.f32 %v485, %v486
    %vm488 = vcmp.lt.f32.partialorder %v427, 0.0025
    %v489 = vsel %vm488, 1, 0
    %v490 = vcvt.s32.f32 %v489
    %vm491 = vcmp.lt.f32.partialorder %v487, 0.0025
    %v492 = vsel %vm491, 1, 0
    %v493 = vcvt.s32.f32 %v492
    %v494 = vld [vmem:[%s4] sm:$0x1]
    %v495 = vld [vmem:[%s5] sm:$0x1]
    %vm496 = vcmask 319488
    %v497 = vsel %vm496, %v490, 0.0
    %498 = vadd.xlane.f32.xlu0 %v497
    %v499 = vpop.xlane.xlu0 %498
    %v500 = vrot.slane %v499, 4
    %v501 = vadd.f32 %v499, %v500
    %v502 = vrot.slane %v501, 2
    %v503 = vadd.f32 %v501, %v502
    %v504 = vrot.slane %v503, 1
    %v505 = vadd.f32 %v503, %v504
    %s506 = vtos %v505
    %v507 = vsel %vm496, %v493, 0.0
    %508 = vadd.xlane.f32.xlu0 %v507
    %v509 = vpop.xlane.xlu0 %508
    %v510 = vrot.slane %v509, 4
    %v511 = vadd.f32 %v509, %v510
    %v512 = vrot.slane %v511, 2
    %v513 = vadd.f32 %v511, %v512
    %v514 = vrot.slane %v513, 1
    %v515 = vadd.f32 %v513, %v514
    %s516 = vtos %v515
    %s517 = sadd.f32 %s506, %s516
    %v518 = vrcp.pop 80.0
    %s519 = vtos %v518
    %s520 = smul.f32 %s517, %s519
    %s521 = ssub.f32 1.0, %s520
    %vm522 = vcmp.ge.f32.partialorder %v490, 0.5
    %v523 = vstv %s521
    %v524 = vstv %s520
    %v525 = vsel %vm522, %v523, %v524
    %vm526 = vcmp.ge.f32.partialorder %v493, 0.5
    %v527 = vsel %vm526, %v523, %v524
    %v528 = vlog2.pop %v494
    %v529 = vmul.f32 %v528, 0.6931472
    %v530 = vmax.f32 %v529, -100.0
    %v531 = vsub.f32 1.0, %v494
    %v532 = vlog2.pop %v531
    %v533 = vmul.f32 %v532, 0.6931472
    %v534 = vmax.f32 %v533, -100.0
    %v535 = vmul.f32 %v490, %v530
    %v536 = vsub.f32 1.0, %v490
    %v537 = vmul.f32 %v536, %v534
    %v538 = vadd.f32 %v535, %v537
    %v539 = vsub.f32 0.0, %v538
    %v540 = vmul.f32 %v525, %v539
    %v541 = vsel %vm496, %v540, 0.0
    %542 = vadd.xlane.f32.xlu0 %v541
    %v543 = vpop.xlane.xlu0 %542
    %v544 = vrot.slane %v543, 4
    %v545 = vadd.f32 %v543, %v544
    %v546 = vrot.slane %v545, 2
    %v547 = vadd.f32 %v545, %v546
    %v548 = vrot.slane %v547, 1
    %v549 = vadd.f32 %v547, %v548
    %s550 = vtos %v549
    %v551 = vlog2.pop %v495
    %v552 = vmul.f32 %v551, 0.6931472
    %v553 = vmax.f32 %v552, -100.0
    %v554 = vsub.f32 1.0, %v495
    %v555 = vlog2.pop %v554
    %v556 = vmul.f32 %v555, 0.6931472
    %v557 = vmax.f32 %v556, -100.0
    %v558 = vmul.f32 %v493, %v553
    %v559 = vsub.f32 1.0, %v493
    %v560 = vmul.f32 %v559, %v557
    %v561 = vadd.f32 %v558, %v560
    %v562 = vsub.f32 0.0, %v561
    %v563 = vmul.f32 %v527, %v562
    %v564 = vsel %vm496, %v563, 0.0
    %565 = vadd.xlane.f32.xlu0 %v564
    %v566 = vpop.xlane.xlu0 %565
    %v567 = vrot.slane %v566, 4
    %v568 = vadd.f32 %v566, %v567
    %v569 = vrot.slane %v568, 2
    %v570 = vadd.f32 %v568, %v569
    %v571 = vrot.slane %v570, 1
    %v572 = vadd.f32 %v570, %v571
    %s573 = vtos %v572
    %s574 = sadd.f32 %s550, %s573
    %v575 = vrcp.pop 80.0
    %s576 = vtos %v575
    %s577 = smul.f32 %s574, %s576
    %vm578 = vcmp.ge.f32.partialorder %v494, 0.5
    %v579 = vsel %vm578, 1, 0
    %v580 = vcvt.s32.f32 %v579
    %vm581 = vcmp.ge.f32.partialorder %v495, 0.5
    %v582 = vsel %vm581, 1, 0
    %v583 = vcvt.s32.f32 %v582
    %v584 = vmul.f32 %v580, %v490
    %v585 = vsel %vm496, %v584, 0.0
    %586 = vadd.xlane.f32.xlu0 %v585
    %v587 = vpop.xlane.xlu0 %586
    %v588 = vrot.slane %v587, 4
    %v589 = vadd.f32 %v587, %v588
    %v590 = vrot.slane %v589, 2
    %v591 = vadd.f32 %v589, %v590
    %v592 = vrot.slane %v591, 1
    %v593 = vadd.f32 %v591, %v592
    %s594 = vtos %v593
    %v595 = vmul.f32 %v583, %v493
    %v596 = vsel %vm496, %v595, 0.0
    %597 = vadd.xlane.f32.xlu0 %v596
    %v598 = vpop.xlane.xlu0 %597
    %v599 = vrot.slane %v598, 4
    %v600 = vadd.f32 %v598, %v599
    %v601 = vrot.slane %v600, 2
    %v602 = vadd.f32 %v600, %v601
    %v603 = vrot.slane %v602, 1
    %v604 = vadd.f32 %v602, %v603
    %s605 = vtos %v604
    %s606 = sadd.f32 %s594, %s605
    %v607 = vsel %vm496, %v580, 0.0
    %608 = vadd.xlane.f32.xlu0 %v607
    %v609 = vpop.xlane.xlu0 %608
    %v610 = vrot.slane %v609, 4
    %v611 = vadd.f32 %v609, %v610
    %v612 = vrot.slane %v611, 2
    %v613 = vadd.f32 %v611, %v612
    %v614 = vrot.slane %v613, 1
    %v615 = vadd.f32 %v613, %v614
    %s616 = vtos %v615
    %v617 = vsel %vm496, %v583, 0.0
    %618 = vadd.xlane.f32.xlu0 %v617
    %v619 = vpop.xlane.xlu0 %618
    %v620 = vrot.slane %v619, 4
    %v621 = vadd.f32 %v619, %v620
    %v622 = vrot.slane %v621, 2
    %v623 = vadd.f32 %v621, %v622
    %v624 = vrot.slane %v623, 1
    %v625 = vadd.f32 %v623, %v624
    %s626 = vtos %v625
    %s627 = sadd.f32 %s616, %s626
    %p628 = scmp.gt.f32.partialorder %s627, 0.0
    %s629 = smax.f32 %s627, 1e-12
    %v630 = vstv %s629
    %v631 = vrcp.pop %v630
    %s632 = vtos %v631
    %s633 = smul.f32 %s606, %s632
    %s634 = scalar_select %p628, %s633, 0.0
    %p635 = scmp.gt.f32.partialorder %s517, 0.0
    %s636 = smax.f32 %s517, 1e-12
    %v637 = vstv %s636
    %v638 = vrcp.pop %v637
    %s639 = vtos %v638
    %s640 = smul.f32 %s606, %s639
    %s641 = scalar_select %p635, %s640, 0.0
    %v642 = vld [vmem:[%s6] sm:$0x1]
    %v643 = vld [vmem:[%s7] sm:$0x1]
    %vm644 = vcmask 1040384
    %v645 = vsel %vm644, %v643, 0.0
    %646 = vadd.xlane.f32.xlu0 %v645
    %v647 = vpop.xlane.xlu0 %646
    %v648 = vrot.slane %v647, 4
    %v649 = vadd.f32 %v647, %v648
    %v650 = vrot.slane %v649, 2
    %v651 = vadd.f32 %v649, %v650
    %v652 = vrot.slane %v651, 1
    %v653 = vadd.f32 %v651, %v652
    %s654 = vtos %v653
    %v655 = vrcp.pop 128.0
    %s656 = vtos %v655
    %s657 = smul.f32 %s654, %s656
    %s658 = ssub.f32 1.0, %s657
    %vm659 = vcmp.ge.f32.partialorder %v643, 0.5
    %v660 = vstv %s658
    %v661 = vstv %s657
    %v662 = vsel %vm659, %v660, %v661
    %v663 = vlog2.pop %v642
    %v664 = vmul.f32 %v663, 0.6931472
    %v665 = vmax.f32 %v664, -100.0
    %v666 = vsub.f32 1.0, %v642
    %v667 = vlog2.pop %v666
    %v668 = vmul.f32 %v667, 0.6931472
    %v669 = vmax.f32 %v668, -100.0
    %v670 = vmul.f32 %v643, %v665
    %v671 = vsub.f32 1.0, %v643
    %v672 = vmul.f32 %v671, %v669
    %v673 = vadd.f32 %v670, %v672
    %v674 = vsub.f32 0.0, %v673
    %v675 = vmul.f32 %v662, %v674
    %v676 = vsel %vm644, %v675, 0.0
    %677 = vadd.xlane.f32.xlu0 %v676
    %v678 = vpop.xlane.xlu0 %677
    %v679 = vrot.slane %v678, 4
    %v680 = vadd.f32 %v678, %v679
    %v681 = vrot.slane %v680, 2
    %v682 = vadd.f32 %v680, %v681
    %v683 = vrot.slane %v682, 1
    %v684 = vadd.f32 %v682, %v683
    %s685 = vtos %v684
    %v686 = vrcp.pop 128.0
    %s687 = vtos %v686
    %s688 = smul.f32 %s685, %s687
    %vm689 = vcmp.ge.f32.partialorder %v642, 0.5
    %v690 = vsel %vm689, 1, 0
    %v691 = vcvt.s32.f32 %v690
    %v692 = vmul.f32 %v691, %v643
    %v693 = vsel %vm644, %v692, 0.0
    %694 = vadd.xlane.f32.xlu0 %v693
    %v695 = vpop.xlane.xlu0 %694
    %v696 = vrot.slane %v695, 4
    %v697 = vadd.f32 %v695, %v696
    %v698 = vrot.slane %v697, 2
    %v699 = vadd.f32 %v697, %v698
    %v700 = vrot.slane %v699, 1
    %v701 = vadd.f32 %v699, %v700
    %s702 = vtos %v701
    %v703 = vsel %vm644, %v691, 0.0
    %704 = vadd.xlane.f32.xlu0 %v703
    %v705 = vpop.xlane.xlu0 %704
    %v706 = vrot.slane %v705, 4
    %v707 = vadd.f32 %v705, %v706
    %v708 = vrot.slane %v707, 2
    %v709 = vadd.f32 %v707, %v708
    %v710 = vrot.slane %v709, 1
    %v711 = vadd.f32 %v709, %v710
    %s712 = vtos %v711
    %p713 = scmp.gt.f32.partialorder %s712, 0.0
    %s714 = smax.f32 %s712, 1e-12
    %v715 = vstv %s714
    %v716 = vrcp.pop %v715
    %s717 = vtos %v716
    %s718 = smul.f32 %s702, %s717
    %s719 = scalar_select %p713, %s718, 0.0
    %p720 = scmp.gt.f32.partialorder %s654, 0.0
    %s721 = smax.f32 %s654, 1e-12
    %v722 = vstv %s721
    %v723 = vrcp.pop %v722
    %s724 = vtos %v723
    %s725 = smul.f32 %s702, %s724
    %s726 = scalar_select %p720, %s725, 0.0
    %v727 = vld [vmem:[%s8] sm:$0xff]
    %v728 = vld [vmem:[%s8 + $0x8] sm:$0xff]
    %v729 = vld [vmem:[%s8 + $0x10] sm:$0xff]
    %v730 = vld [vmem:[%s8 + $0x18] sm:$0xff]
    %v731 = vld [vmem:[%s8 + $0x20] sm:$0xff]
    %v732 = vld [vmem:[%s9] sm:$0x7]
    %734 = vset.pattern.permute.xlu0 0
    %735 = vperm.xlu0 %734, %v727
    %v736 = vpop.permute.xlu0 %735
    %739 = vset.pattern.permute.xlu0 0
    %740 = vperm.xlu0 %739, %v728
    %v741 = vpop.permute.xlu0 %740
    %744 = vset.pattern.permute.xlu0 0
    %745 = vperm.xlu0 %744, %v729
    %v746 = vpop.permute.xlu0 %745
    %749 = vset.pattern.permute.xlu0 0
    %750 = vperm.xlu0 %749, %v730
    %v751 = vpop.permute.xlu0 %750
    %754 = vset.pattern.permute.xlu0 0
    %755 = vperm.xlu0 %754, %v731
    %v756 = vpop.permute.xlu0 %755
    %v758 = vlaneseq
    %v759 = vshrl.u32 %v758, 7
    %v760 = vsub.s32 0, %v759
    %v761 = vrot.slane %v732, %v760
    %v762 = vsub.f32 %v736, %v761
    %v763 = vsub.f32 %v741, %v761
    %v764 = vsub.f32 %v746, %v761
    %v765 = vsub.f32 %v751, %v761
    %v766 = vsub.f32 %v756, %v761
    %v767 = vmul.f32 %v762, %v762
    %v768 = vmul.f32 %v763, %v763
    %v769 = vmul.f32 %v764, %v764
    %v770 = vmul.f32 %v765, %v765
    %v771 = vmul.f32 %v766, %v766
    %772 = vset.pattern.permute.xlu0 1
    %773 = vperm.xlu0 %772, %v727
    %v774 = vpop.permute.xlu0 %773
    %776 = vset.pattern.permute.xlu0 1
    %777 = vperm.xlu0 %776, %v728
    %v778 = vpop.permute.xlu0 %777
    %780 = vset.pattern.permute.xlu0 1
    %781 = vperm.xlu0 %780, %v729
    %v782 = vpop.permute.xlu0 %781
    %784 = vset.pattern.permute.xlu0 1
    %785 = vperm.xlu0 %784, %v730
    %v786 = vpop.permute.xlu0 %785
    %788 = vset.pattern.permute.xlu0 1
    %789 = vperm.xlu0 %788, %v731
    %v790 = vpop.permute.xlu0 %789
    %v792 = vlaneseq
    %v793 = vshrl.u32 %v792, 7
    %v794 = vsub.s32 1, %v793
    %v795 = vrot.slane %v732, %v794
    %v796 = vsub.f32 %v774, %v795
    %v797 = vsub.f32 %v778, %v795
    %v798 = vsub.f32 %v782, %v795
    %v799 = vsub.f32 %v786, %v795
    %v800 = vsub.f32 %v790, %v795
    %v801 = vmul.f32 %v796, %v796
    %v802 = vmul.f32 %v797, %v797
    %v803 = vmul.f32 %v798, %v798
    %v804 = vmul.f32 %v799, %v799
    %v805 = vmul.f32 %v800, %v800
    %v806 = vadd.f32 %v767, %v801
    %v807 = vadd.f32 %v768, %v802
    %v808 = vadd.f32 %v769, %v803
    %v809 = vadd.f32 %v770, %v804
    %v810 = vadd.f32 %v771, %v805
    %811 = vset.pattern.permute.xlu0 2
    %812 = vperm.xlu0 %811, %v727
    %v813 = vpop.permute.xlu0 %812
    %815 = vset.pattern.permute.xlu0 2
    %816 = vperm.xlu0 %815, %v728
    %v817 = vpop.permute.xlu0 %816
    %819 = vset.pattern.permute.xlu0 2
    %820 = vperm.xlu0 %819, %v729
    %v821 = vpop.permute.xlu0 %820
    %823 = vset.pattern.permute.xlu0 2
    %824 = vperm.xlu0 %823, %v730
    %v825 = vpop.permute.xlu0 %824
    %827 = vset.pattern.permute.xlu0 2
    %828 = vperm.xlu0 %827, %v731
    %v829 = vpop.permute.xlu0 %828
    %v831 = vlaneseq
    %v832 = vshrl.u32 %v831, 7
    %v833 = vsub.s32 2, %v832
    %v834 = vrot.slane %v732, %v833
    %v835 = vsub.f32 %v813, %v834
    %v836 = vsub.f32 %v817, %v834
    %v837 = vsub.f32 %v821, %v834
    %v838 = vsub.f32 %v825, %v834
    %v839 = vsub.f32 %v829, %v834
    %v840 = vmul.f32 %v835, %v835
    %v841 = vmul.f32 %v836, %v836
    %v842 = vmul.f32 %v837, %v837
    %v843 = vmul.f32 %v838, %v838
    %v844 = vmul.f32 %v839, %v839
    %v845 = vadd.f32 %v806, %v840
    %v846 = vadd.f32 %v807, %v841
    %v847 = vadd.f32 %v808, %v842
    %v848 = vadd.f32 %v809, %v843
    %v849 = vadd.f32 %v810, %v844
    %v850 = vmul.f32 %v178, 2.0
    %v851 = vmul.f32 %v183, 2.0
    %v852 = vmul.f32 %v188, 2.0
    %v853 = vmul.f32 %v193, 2.0
    %v854 = vmul.f32 %v198, 2.0
    %v855 = vsub.f32 2.0, %v850
    %v856 = vsub.f32 2.0, %v851
    %v857 = vsub.f32 2.0, %v852
    %v858 = vsub.f32 2.0, %v853
    %v859 = vsub.f32 2.0, %v854
    %v860 = vmax.f32 %v855, 0.0
    %v861 = vmax.f32 %v856, 0.0
    %v862 = vmax.f32 %v857, 0.0
    %v863 = vmax.f32 %v858, 0.0
    %v864 = vmax.f32 %v859, 0.0
    %v865 = vrsqrt.pop %v860
    %v866 = vmul.f32 %v860, %v865
    %vm867 = vcmp.eq.f32.partialorder %v860, inf
    %v868 = vsel %vm867, %v860, %v866
    %vm869 = vcmp.eq.f32.partialorder %v860, 0.0
    %v870 = vand.u32 %v860, 2147483648
    %v871 = vsel %vm869, %v870, %v868
    %v872 = vrsqrt.pop %v861
    %v873 = vmul.f32 %v861, %v872
    %vm874 = vcmp.eq.f32.partialorder %v861, inf
    %v875 = vsel %vm874, %v861, %v873
    %vm876 = vcmp.eq.f32.partialorder %v861, 0.0
    %v877 = vand.u32 %v861, 2147483648
    %v878 = vsel %vm876, %v877, %v875
    %v879 = vrsqrt.pop %v862
    %v880 = vmul.f32 %v862, %v879
    %vm881 = vcmp.eq.f32.partialorder %v862, inf
    %v882 = vsel %vm881, %v862, %v880
    %vm883 = vcmp.eq.f32.partialorder %v862, 0.0
    %v884 = vand.u32 %v862, 2147483648
    %v885 = vsel %vm883, %v884, %v882
    %v886 = vrsqrt.pop %v863
    %v887 = vmul.f32 %v863, %v886
    %vm888 = vcmp.eq.f32.partialorder %v863, inf
    %v889 = vsel %vm888, %v863, %v887
    %vm890 = vcmp.eq.f32.partialorder %v863, 0.0
    %v891 = vand.u32 %v863, 2147483648
    %v892 = vsel %vm890, %v891, %v889
    %v893 = vrsqrt.pop %v864
    %v894 = vmul.f32 %v864, %v893
    %vm895 = vcmp.eq.f32.partialorder %v864, inf
    %v896 = vsel %vm895, %v864, %v894
    %vm897 = vcmp.eq.f32.partialorder %v864, 0.0
    %v898 = vand.u32 %v864, 2147483648
    %v899 = vsel %vm897, %v898, %v896
    %vm900 = vcmp.lt.f32.partialorder %v845, 0.0025
    %vm901 = vcmp.lt.f32.partialorder %v846, 0.0025
    %vm902 = vcmp.lt.f32.partialorder %v847, 0.0025
    %vm903 = vcmp.lt.f32.partialorder %v848, 0.0025
    %vm904 = vcmp.lt.f32.partialorder %v849, 0.0025
    %v905 = vsel %vm900, 1, 0
    %v906 = vsel %vm901, 1, 0
    %v907 = vsel %vm902, 1, 0
    %v908 = vsel %vm903, 1, 0
    %v909 = vsel %vm904, 1, 0
    %v910 = vcvt.s32.f32 %v905
    %v911 = vcvt.s32.f32 %v906
    %v912 = vcvt.s32.f32 %v907
    %v913 = vcvt.s32.f32 %v908
    %v914 = vcvt.s32.f32 %v909
    %v915 = vsel %vm337, %v910, 0.0
    %916 = vadd.xlane.f32.xlu0 %v915
    %v917 = vpop.xlane.xlu0 %916
    %v918 = vsel %vm337, %v911, 0.0
    %919 = vadd.xlane.f32.xlu0 %v918
    %v920 = vpop.xlane.xlu0 %919
    %v921 = vsel %vm337, %v912, 0.0
    %922 = vadd.xlane.f32.xlu0 %v921
    %v923 = vpop.xlane.xlu0 %922
    %v924 = vsel %vm337, %v913, 0.0
    %925 = vadd.xlane.f32.xlu0 %v924
    %v926 = vpop.xlane.xlu0 %925
    %v927 = vsel %vm337, %v914, 0.0
    %928 = vadd.xlane.f32.xlu0 %v927
    %v929 = vpop.xlane.xlu0 %928
    %v930 = vadd.f32 %v915, %v918
    %v931 = vadd.f32 %v930, %v921
    %v932 = vadd.f32 %v931, %v924
    %v933 = vadd.f32 %v932, %v927
    %v934 = vrot.slane %v933, 4
    %v935 = vadd.f32 %v933, %v934
    %v936 = vrot.slane %v935, 2
    %v937 = vadd.f32 %v935, %v936
    %v938 = vrot.slane %v937, 1
    %v939 = vadd.f32 %v937, %v938
    %v940 = vsub.f32 %v871, 0.1
    %v941 = vsub.f32 %v878, 0.1
    %v942 = vsub.f32 %v885, 0.1
    %v943 = vsub.f32 %v892, 0.1
    %v944 = vsub.f32 %v899, 0.1
    %v945 = vmax.f32 %v940, 0.0
    %v946 = vmax.f32 %v941, 0.0
    %v947 = vmax.f32 %v942, 0.0
    %v948 = vmax.f32 %v943, 0.0
    %v949 = vmax.f32 %v944, 0.0
    %v950 = vsel %vm900, %v945, 0.0
    %v951 = vsel %vm901, %v946, 0.0
    %v952 = vsel %vm902, %v947, 0.0
    %v953 = vsel %vm903, %v948, 0.0
    %v954 = vsel %vm904, %v949, 0.0
    %v955 = vmul.f32 %v940, 16.0
    %v956 = vmul.f32 %v941, 16.0
    %v957 = vmul.f32 %v942, 16.0
    %v958 = vmul.f32 %v943, 16.0
    %v959 = vmul.f32 %v944, 16.0
    %v960 = vmul.f32 %v955, %v950
    %v961 = vmul.f32 %v956, %v951
    %v962 = vmul.f32 %v957, %v952
    %v963 = vmul.f32 %v958, %v953
    %v964 = vmul.f32 %v959, %v954
    %v965 = vmin.f32 %v960, 80.0
    %v966 = vmin.f32 %v961, 80.0
    %v967 = vmin.f32 %v962, 80.0
    %v968 = vmin.f32 %v963, 80.0
    %v969 = vmin.f32 %v964, 80.0
    %v970 = vmul.f32 %v965, 1.442695
    %v971 = vpow.pop %v970
    %v972 = vmul.f32 %v966, 1.442695
    %v973 = vpow.pop %v972
    %v974 = vmul.f32 %v967, 1.442695
    %v975 = vpow.pop %v974
    %v976 = vmul.f32 %v968, 1.442695
    %v977 = vpow.pop %v976
    %v978 = vmul.f32 %v969, 1.442695
    %v979 = vpow.pop %v978
    %v980 = vsel %vm337, %v971, 0.0
    %981 = vadd.xlane.f32.xlu0 %v980
    %v982 = vpop.xlane.xlu0 %981
    %v983 = vsel %vm337, %v973, 0.0
    %984 = vadd.xlane.f32.xlu0 %v983
    %v985 = vpop.xlane.xlu0 %984
    %v986 = vsel %vm337, %v975, 0.0
    %987 = vadd.xlane.f32.xlu0 %v986
    %v988 = vpop.xlane.xlu0 %987
    %v989 = vsel %vm337, %v977, 0.0
    %990 = vadd.xlane.f32.xlu0 %v989
    %v991 = vpop.xlane.xlu0 %990
    %v992 = vsel %vm337, %v979, 0.0
    %993 = vadd.xlane.f32.xlu0 %v992
    %v994 = vpop.xlane.xlu0 %993
    %v995 = vadd.f32 %v980, %v983
    %v996 = vadd.f32 %v995, %v986
    %v997 = vadd.f32 %v996, %v989
    %v998 = vadd.f32 %v997, %v992
    %v999 = vrot.slane %v998, 4
    %v1000 = vadd.f32 %v998, %v999
    %v1001 = vrot.slane %v1000, 2
    %v1002 = vadd.f32 %v1000, %v1001
    %v1003 = vrot.slane %v1002, 1
    %v1004 = vadd.f32 %v1002, %v1003
    %vm1005 = vcmp.gt.f32.partialorder %v845, 0.01
    %vm1006 = vcmp.gt.f32.partialorder %v846, 0.01
    %vm1007 = vcmp.gt.f32.partialorder %v847, 0.01
    %vm1008 = vcmp.gt.f32.partialorder %v848, 0.01
    %vm1009 = vcmp.gt.f32.partialorder %v849, 0.01
    %v1010 = vsel %vm1005, 1, 0
    %v1011 = vsel %vm1006, 1, 0
    %v1012 = vsel %vm1007, 1, 0
    %v1013 = vsel %vm1008, 1, 0
    %v1014 = vsel %vm1009, 1, 0
    %v1015 = vcvt.s32.f32 %v1010
    %v1016 = vcvt.s32.f32 %v1011
    %v1017 = vcvt.s32.f32 %v1012
    %v1018 = vcvt.s32.f32 %v1013
    %v1019 = vcvt.s32.f32 %v1014
    %v1020 = vsel %vm337, %v1015, 0.0
    %1021 = vadd.xlane.f32.xlu0 %v1020
    %v1022 = vpop.xlane.xlu0 %1021
    %v1023 = vsel %vm337, %v1016, 0.0
    %1024 = vadd.xlane.f32.xlu0 %v1023
    %v1025 = vpop.xlane.xlu0 %1024
    %v1026 = vsel %vm337, %v1017, 0.0
    %1027 = vadd.xlane.f32.xlu0 %v1026
    %v1028 = vpop.xlane.xlu0 %1027
    %v1029 = vsel %vm337, %v1018, 0.0
    %1030 = vadd.xlane.f32.xlu0 %v1029
    %v1031 = vpop.xlane.xlu0 %1030
    %v1032 = vsel %vm337, %v1019, 0.0
    %1033 = vadd.xlane.f32.xlu0 %v1032
    %v1034 = vpop.xlane.xlu0 %1033
    %v1035 = vadd.f32 %v1020, %v1023
    %v1036 = vadd.f32 %v1035, %v1026
    %v1037 = vadd.f32 %v1036, %v1029
    %v1038 = vadd.f32 %v1037, %v1032
    %v1039 = vrot.slane %v1038, 4
    %v1040 = vadd.f32 %v1038, %v1039
    %v1041 = vrot.slane %v1040, 2
    %v1042 = vadd.f32 %v1040, %v1041
    %v1043 = vrot.slane %v1042, 1
    %v1044 = vadd.f32 %v1042, %v1043
    %v1045 = vsub.f32 1.4, %v871
    %v1046 = vsub.f32 1.4, %v878
    %v1047 = vsub.f32 1.4, %v885
    %v1048 = vsub.f32 1.4, %v892
    %v1049 = vsub.f32 1.4, %v899
    %v1050 = vmax.f32 %v1045, 0.0
    %v1051 = vmax.f32 %v1046, 0.0
    %v1052 = vmax.f32 %v1047, 0.0
    %v1053 = vmax.f32 %v1048, 0.0
    %v1054 = vmax.f32 %v1049, 0.0
    %v1055 = vsel %vm1005, %v1050, 0.0
    %v1056 = vsel %vm1006, %v1051, 0.0
    %v1057 = vsel %vm1007, %v1052, 0.0
    %v1058 = vsel %vm1008, %v1053, 0.0
    %v1059 = vsel %vm1009, %v1054, 0.0
    %v1060 = vmul.f32 %v1045, 16.0
    %v1061 = vmul.f32 %v1046, 16.0
    %v1062 = vmul.f32 %v1047, 16.0
    %v1063 = vmul.f32 %v1048, 16.0
    %v1064 = vmul.f32 %v1049, 16.0
    %v1065 = vmul.f32 %v1060, %v1055
    %v1066 = vmul.f32 %v1061, %v1056
    %v1067 = vmul.f32 %v1062, %v1057
    %v1068 = vmul.f32 %v1063, %v1058
    %v1069 = vmul.f32 %v1064, %v1059
    %v1070 = vmin.f32 %v1065, 80.0
    %v1071 = vmin.f32 %v1066, 80.0
    %v1072 = vmin.f32 %v1067, 80.0
    %v1073 = vmin.f32 %v1068, 80.0
    %v1074 = vmin.f32 %v1069, 80.0
    %v1075 = vmul.f32 %v1070, 1.442695
    %v1076 = vpow.pop %v1075
    %v1077 = vmul.f32 %v1071, 1.442695
    %v1078 = vpow.pop %v1077
    %v1079 = vmul.f32 %v1072, 1.442695
    %v1080 = vpow.pop %v1079
    %v1081 = vmul.f32 %v1073, 1.442695
    %v1082 = vpow.pop %v1081
    %v1083 = vmul.f32 %v1074, 1.442695
    %v1084 = vpow.pop %v1083
    %v1085 = vsel %vm337, %v1076, 0.0
    %1086 = vadd.xlane.f32.xlu0 %v1085
    %v1087 = vpop.xlane.xlu0 %1086
    %v1088 = vsel %vm337, %v1078, 0.0
    %1089 = vadd.xlane.f32.xlu0 %v1088
    %v1090 = vpop.xlane.xlu0 %1089
    %v1091 = vsel %vm337, %v1080, 0.0
    %1092 = vadd.xlane.f32.xlu0 %v1091
    %v1093 = vpop.xlane.xlu0 %1092
    %v1094 = vsel %vm337, %v1082, 0.0
    %1095 = vadd.xlane.f32.xlu0 %v1094
    %v1096 = vpop.xlane.xlu0 %1095
    %v1097 = vsel %vm337, %v1084, 0.0
    %1098 = vadd.xlane.f32.xlu0 %v1097
    %v1099 = vpop.xlane.xlu0 %1098
    %v1100 = vadd.f32 %v1085, %v1088
    %v1101 = vadd.f32 %v1100, %v1091
    %v1102 = vadd.f32 %v1101, %v1094
    %v1103 = vadd.f32 %v1102, %v1097
    %v1104 = vrot.slane %v1103, 4
    %v1105 = vadd.f32 %v1103, %v1104
    %v1106 = vrot.slane %v1105, 2
    %v1107 = vadd.f32 %v1105, %v1106
    %v1108 = vrot.slane %v1107, 1
    %v1109 = vadd.f32 %v1107, %v1108
    %vm1110 = vcmp.gt.f32.partialorder %v917, 0.0
    %vm1111 = vcmp.gt.f32.partialorder %v920, 0.0
    %vm1112 = vcmp.gt.f32.partialorder %v923, 0.0
    %vm1113 = vcmp.gt.f32.partialorder %v926, 0.0
    %vm1114 = vcmp.gt.f32.partialorder %v929, 0.0
    %vm1115 = vcmp.gt.f32.partialorder %v1022, 0.0
    %vm1116 = vcmp.gt.f32.partialorder %v1025, 0.0
    %vm1117 = vcmp.gt.f32.partialorder %v1028, 0.0
    %vm1118 = vcmp.gt.f32.partialorder %v1031, 0.0
    %vm1119 = vcmp.gt.f32.partialorder %v1034, 0.0
    %vm1120 = vmand %vm1110, %vm1115
    %vm1121 = vmand %vm1111, %vm1116
    %vm1122 = vmand %vm1112, %vm1117
    %vm1123 = vmand %vm1113, %vm1118
    %vm1124 = vmand %vm1114, %vm1119
    %vm1125 = vcmp.gt.f32.partialorder %v939, 0.0
    %vm1126 = vcmp.gt.f32.partialorder %v1044, 0.0
    %vm1127 = vmand %vm1125, %vm1126
    %v1128 = vsel %vm1120, 1, 0
    %v1129 = vsel %vm1121, 1, 0
    %v1130 = vsel %vm1122, 1, 0
    %v1131 = vsel %vm1123, 1, 0
    %v1132 = vsel %vm1124, 1, 0
    %v1133 = vcvt.s32.f32 %v1128
    %v1134 = vcvt.s32.f32 %v1129
    %v1135 = vcvt.s32.f32 %v1130
    %v1136 = vcvt.s32.f32 %v1131
    %v1137 = vcvt.s32.f32 %v1132
    %v1138 = vsel %vm1127, 1, 0
    %v1139 = vcvt.s32.f32 %v1138
    %v1140 = vmul.f32 %v982, %v1087
    %v1141 = vmul.f32 %v985, %v1090
    %v1142 = vmul.f32 %v988, %v1093
    %v1143 = vmul.f32 %v991, %v1096
    %v1144 = vmul.f32 %v994, %v1099
    %v1145 = vsel %vm1120, %v1140, 1e-20
    %v1146 = vsel %vm1121, %v1141, 1e-20
    %v1147 = vsel %vm1122, %v1142, 1e-20
    %v1148 = vsel %vm1123, %v1143, 1e-20
    %v1149 = vsel %vm1124, %v1144, 1e-20
    %v1150 = vmul.f32 %v1004, %v1109
    %v1151 = vsel %vm1127, %v1150, 1e-20
    %v1152 = vsel %vm403, %v1145, 0.0
    %v1153 = vsel %vm404, %v1146, 0.0
    %v1154 = vsel %vm405, %v1147, 0.0
    %v1155 = vsel %vm406, %v1148, 0.0
    %v1156 = vsel %vm407, %v1149, 0.0
    %v1157 = vsel %vm337, %v1152, 0.0
    %v1158 = vsel %vm337, %v1153, 0.0
    %v1159 = vadd.f32 %v1157, %v1158
    %v1160 = vsel %vm337, %v1154, 0.0
    %v1161 = vadd.f32 %v1159, %v1160
    %v1162 = vsel %vm337, %v1155, 0.0
    %v1163 = vadd.f32 %v1161, %v1162
    %v1164 = vsel %vm337, %v1156, 0.0
    %v1165 = vadd.f32 %v1163, %v1164
    %v1166 = vrot.slane %v1165, 4
    %v1167 = vadd.f32 %v1165, %v1166
    %v1168 = vrot.slane %v1167, 2
    %v1169 = vadd.f32 %v1167, %v1168
    %v1170 = vrot.slane %v1169, 1
    %v1171 = vadd.f32 %v1169, %v1170
    %v1172 = vlog2.pop %v1171
    %v1173 = vmul.f32 %v1172, 0.6931472
    %v1174 = vmax.f32 %v1173, 0.0
    %v1175 = vand.u32 2147483647, %v1173
    %v1176 = vsub.f32 0.0, %v1175
    %v1177 = vmul.f32 %v1176, 1.442695
    %v1178 = vpow.pop %v1177
    %v1179 = vadd.f32 %v1178, 1.0
    %v1180 = vlog2.pop %v1179
    %v1181 = vmul.f32 %v1180, 0.6931472
    %v1182 = vmul.f32 -0.5, %v1178
    %v1183 = vadd.f32 %v1182, 1.0
    %v1184 = vmul.f32 %v1183, %v1178
    %v1185 = vand.u32 2147483647, %v1178
    %vm1186 = vcmp.lt.f32.partialorder %v1185, 0.0004427343
    %v1187 = vsel %vm1186, %v1184, %v1181
    %v1188 = vadd.f32 %v1174, %v1187
    %v1189 = vrcp.pop 16.0
    %v1190 = vmul.f32 %v1188, %v1189
    %v1191 = vlog2.pop %v1151
    %v1192 = vmul.f32 %v1191, 0.6931472
    %v1193 = vmax.f32 %v1192, 0.0
    %v1194 = vand.u32 2147483647, %v1192
    %v1195 = vsub.f32 0.0, %v1194
    %v1196 = vmul.f32 %v1195, 1.442695
    %v1197 = vpow.pop %v1196
    %v1198 = vadd.f32 %v1197, 1.0
    %v1199 = vlog2.pop %v1198
    %v1200 = vmul.f32 %v1199, 0.6931472
    %v1201 = vmul.f32 -0.5, %v1197
    %v1202 = vadd.f32 %v1201, 1.0
    %v1203 = vmul.f32 %v1202, %v1197
    %v1204 = vand.u32 2147483647, %v1197
    %vm1205 = vcmp.lt.f32.partialorder %v1204, 0.0004427343
    %v1206 = vsel %vm1205, %v1203, %v1200
    %v1207 = vadd.f32 %v1193, %v1206
    %v1208 = vmul.f32 %v1207, %v1189
    %v1209 = vsel %vm496, %v1190, 0.0
    %1210 = vadd.xlane.f32.xlu0 %v1209
    %v1211 = vpop.xlane.xlu0 %1210
    %v1212 = vrot.slane %v1211, 4
    %v1213 = vadd.f32 %v1211, %v1212
    %v1214 = vrot.slane %v1213, 2
    %v1215 = vadd.f32 %v1213, %v1214
    %v1216 = vrot.slane %v1215, 1
    %v1217 = vadd.f32 %v1215, %v1216
    %s1218 = vtos %v1217
    %vm1219 = vcmask 7168
    %v1220 = vsel %vm1219, %v1133, 0.0
    %v1221 = vsel %vm1219, %v1134, 0.0
    %v1222 = vadd.f32 %v1220, %v1221
    %v1223 = vsel %vm1219, %v1135, 0.0
    %v1224 = vadd.f32 %v1222, %v1223
    %v1225 = vsel %vm1219, %v1136, 0.0
    %v1226 = vadd.f32 %v1224, %v1225
    %v1227 = vsel %vm1219, %v1137, 0.0
    %v1228 = vadd.f32 %v1226, %v1227
    %1229 = vadd.xlane.f32.xlu0 %v1228
    %v1230 = vpop.xlane.xlu0 %1229
    %v1231 = vrot.slane %v1230, 4
    %v1232 = vadd.f32 %v1230, %v1231
    %v1233 = vrot.slane %v1232, 2
    %v1234 = vadd.f32 %v1232, %v1233
    %v1235 = vrot.slane %v1234, 1
    %v1236 = vadd.f32 %v1234, %v1235
    %s1237 = vtos %v1236
    %s1238 = smax.f32 %s1237, 1.0
    %v1239 = vstv %s1238
    %v1240 = vrcp.pop %v1239
    %s1241 = vtos %v1240
    %s1242 = smul.f32 %s1218, %s1241
    %v1243 = vsel %vm496, %v1208, 0.0
    %1244 = vadd.xlane.f32.xlu0 %v1243
    %v1245 = vpop.xlane.xlu0 %1244
    %v1246 = vrot.slane %v1245, 4
    %v1247 = vadd.f32 %v1245, %v1246
    %v1248 = vrot.slane %v1247, 2
    %v1249 = vadd.f32 %v1247, %v1248
    %v1250 = vrot.slane %v1249, 1
    %v1251 = vadd.f32 %v1249, %v1250
    %s1252 = vtos %v1251
    %v1253 = vsel %vm496, %v1139, 0.0
    %1254 = vadd.xlane.f32.xlu0 %v1253
    %v1255 = vpop.xlane.xlu0 %1254
    %v1256 = vrot.slane %v1255, 4
    %v1257 = vadd.f32 %v1255, %v1256
    %v1258 = vrot.slane %v1257, 2
    %v1259 = vadd.f32 %v1257, %v1258
    %v1260 = vrot.slane %v1259, 1
    %v1261 = vadd.f32 %v1259, %v1260
    %s1262 = vtos %v1261
    %s1263 = smax.f32 %s1262, 1.0
    %v1264 = vstv %s1263
    %v1265 = vrcp.pop %v1264
    %s1266 = vtos %v1265
    %s1267 = smul.f32 %s1252, %s1266
    %s1268 = sadd.f32 %s1242, %s1267
    %s1269 = smul.f32 %s1268, 0.5
    %v1270 = vsel %vm337, %v871, inf
    %1271 = vmin.xlane.f32.xlu0 %v1270
    %v1272 = vpop.xlane.xlu0 %1271
    %v1273 = vsel %vm337, %v878, inf
    %1274 = vmin.xlane.f32.xlu0 %v1273
    %v1275 = vpop.xlane.xlu0 %1274
    %v1276 = vsel %vm337, %v885, inf
    %1277 = vmin.xlane.f32.xlu0 %v1276
    %v1278 = vpop.xlane.xlu0 %1277
    %v1279 = vsel %vm337, %v892, inf
    %1280 = vmin.xlane.f32.xlu0 %v1279
    %v1281 = vpop.xlane.xlu0 %1280
    %v1282 = vsel %vm337, %v899, inf
    %1283 = vmin.xlane.f32.xlu0 %v1282
    %v1284 = vpop.xlane.xlu0 %1283
    %vm1285 = vcmp.eq.f32.partialorder %v871, %v1272
    %vm1286 = vcmp.eq.f32.partialorder %v878, %v1275
    %vm1287 = vcmp.eq.f32.partialorder %v885, %v1278
    %vm1288 = vcmp.eq.f32.partialorder %v892, %v1281
    %vm1289 = vcmp.eq.f32.partialorder %v899, %v1284
    %v1290 = vsel %vm1285, %v325, 40.0
    %v1291 = vsel %vm1286, %v325, 40.0
    %v1292 = vsel %vm1287, %v325, 40.0
    %v1293 = vsel %vm1288, %v325, 40.0
    %v1294 = vsel %vm1289, %v325, 40.0
    %v1295 = vsel %vm337, %v1290, inf
    %1296 = vmin.xlane.f32.xlu0 %v1295
    %v1297 = vpop.xlane.xlu0 %1296
    %v1298 = vsel %vm337, %v1291, inf
    %1299 = vmin.xlane.f32.xlu0 %v1298
    %v1300 = vpop.xlane.xlu0 %1299
    %v1301 = vsel %vm337, %v1292, inf
    %1302 = vmin.xlane.f32.xlu0 %v1301
    %v1303 = vpop.xlane.xlu0 %1302
    %v1304 = vsel %vm337, %v1293, inf
    %1305 = vmin.xlane.f32.xlu0 %v1304
    %v1306 = vpop.xlane.xlu0 %1305
    %v1307 = vsel %vm337, %v1294, inf
    %1308 = vmin.xlane.f32.xlu0 %v1307
    %v1309 = vpop.xlane.xlu0 %1308
    %vm1310 = vcmp.eq.f32.partialorder %v325, %v1297
    %vm1311 = vcmp.eq.f32.partialorder %v325, %v1300
    %vm1312 = vcmp.eq.f32.partialorder %v325, %v1303
    %vm1313 = vcmp.eq.f32.partialorder %v325, %v1306
    %vm1314 = vcmp.eq.f32.partialorder %v325, %v1309
    %v1315 = vsel %vm1310, %v845, 0.0
    %v1316 = vsel %vm1311, %v846, 0.0
    %v1317 = vsel %vm1312, %v847, 0.0
    %v1318 = vsel %vm1313, %v848, 0.0
    %v1319 = vsel %vm1314, %v849, 0.0
    %v1320 = vsel %vm337, %v1315, 0.0
    %1321 = vadd.xlane.f32.xlu0 %v1320
    %v1322 = vpop.xlane.xlu0 %1321
    %v1323 = vsel %vm337, %v1316, 0.0
    %1324 = vadd.xlane.f32.xlu0 %v1323
    %v1325 = vpop.xlane.xlu0 %1324
    %v1326 = vsel %vm337, %v1317, 0.0
    %1327 = vadd.xlane.f32.xlu0 %v1326
    %v1328 = vpop.xlane.xlu0 %1327
    %v1329 = vsel %vm337, %v1318, 0.0
    %1330 = vadd.xlane.f32.xlu0 %v1329
    %v1331 = vpop.xlane.xlu0 %1330
    %v1332 = vsel %vm337, %v1319, 0.0
    %1333 = vadd.xlane.f32.xlu0 %v1332
    %v1334 = vpop.xlane.xlu0 %1333
    %v1335 = vsel %vm1110, 1, 0
    %v1336 = vsel %vm1111, 1, 0
    %v1337 = vsel %vm1112, 1, 0
    %v1338 = vsel %vm1113, 1, 0
    %v1339 = vsel %vm1114, 1, 0
    %v1340 = vcvt.s32.f32 %v1335
    %v1341 = vcvt.s32.f32 %v1336
    %v1342 = vcvt.s32.f32 %v1337
    %v1343 = vcvt.s32.f32 %v1338
    %v1344 = vcvt.s32.f32 %v1339
    %v1345 = vsel %vm1219, %v1340, 0.0
    %v1346 = vsel %vm1219, %v1341, 0.0
    %v1347 = vadd.f32 %v1345, %v1346
    %v1348 = vsel %vm1219, %v1342, 0.0
    %v1349 = vadd.f32 %v1347, %v1348
    %v1350 = vsel %vm1219, %v1343, 0.0
    %v1351 = vadd.f32 %v1349, %v1350
    %v1352 = vsel %vm1219, %v1344, 0.0
    %v1353 = vadd.f32 %v1351, %v1352
    %1354 = vadd.xlane.f32.xlu0 %v1353
    %v1355 = vpop.xlane.xlu0 %1354
    %v1356 = vrot.slane %v1355, 4
    %v1357 = vadd.f32 %v1355, %v1356
    %v1358 = vrot.slane %v1357, 2
    %v1359 = vadd.f32 %v1357, %v1358
    %v1360 = vrot.slane %v1359, 1
    %v1361 = vadd.f32 %v1359, %v1360
    %s1362 = vtos %v1361
    %s1363 = sadd.f32 %s1362, 1e-12
    %vm1364 = vcmp.lt.f32.partialorder %v1322, 0.0025
    %vm1365 = vcmp.lt.f32.partialorder %v1325, 0.0025
    %vm1366 = vcmp.lt.f32.partialorder %v1328, 0.0025
    %vm1367 = vcmp.lt.f32.partialorder %v1331, 0.0025
    %vm1368 = vcmp.lt.f32.partialorder %v1334, 0.0025
    %v1369 = vsel %vm1364, 1, 0
    %v1370 = vsel %vm1365, 1, 0
    %v1371 = vsel %vm1366, 1, 0
    %v1372 = vsel %vm1367, 1, 0
    %v1373 = vsel %vm1368, 1, 0
    %v1374 = vcvt.s32.f32 %v1369
    %v1375 = vcvt.s32.f32 %v1370
    %v1376 = vcvt.s32.f32 %v1371
    %v1377 = vcvt.s32.f32 %v1372
    %v1378 = vcvt.s32.f32 %v1373
    %v1379 = vmul.f32 %v1374, %v1340
    %v1380 = vmul.f32 %v1375, %v1341
    %v1381 = vmul.f32 %v1376, %v1342
    %v1382 = vmul.f32 %v1377, %v1343
    %v1383 = vmul.f32 %v1378, %v1344
    %v1384 = vsel %vm1219, %v1379, 0.0
    %v1385 = vsel %vm1219, %v1380, 0.0
    %v1386 = vadd.f32 %v1384, %v1385
    %v1387 = vsel %vm1219, %v1381, 0.0
    %v1388 = vadd.f32 %v1386, %v1387
    %v1389 = vsel %vm1219, %v1382, 0.0
    %v1390 = vadd.f32 %v1388, %v1389
    %v1391 = vsel %vm1219, %v1383, 0.0
    %v1392 = vadd.f32 %v1390, %v1391
    %1393 = vadd.xlane.f32.xlu0 %v1392
    %v1394 = vpop.xlane.xlu0 %1393
    %v1395 = vrot.slane %v1394, 4
    %v1396 = vadd.f32 %v1394, %v1395
    %v1397 = vrot.slane %v1396, 2
    %v1398 = vadd.f32 %v1396, %v1397
    %v1399 = vrot.slane %v1398, 1
    %v1400 = vadd.f32 %v1398, %v1399
    %s1401 = vtos %v1400
    %v1402 = vstv %s1363
    %v1403 = vrcp.pop %v1402
    %s1404 = vtos %v1403
    %s1405 = smul.f32 %s1401, %s1404
    %s1406 = scalar_lea.smem [#allocation2], 0
    %1407 = sst [smem:[%s1406]] %s577
    %s1408 = scalar_lea.smem [#allocation2], 1
    %1409 = sst [smem:[%s1408]] %s634
    %s1410 = scalar_lea.smem [#allocation2], 2
    %1411 = sst [smem:[%s1410]] %s641
    %s1412 = scalar_lea.smem [#allocation2], 3
    %1413 = sst [smem:[%s1412]] %s688
    %s1414 = scalar_lea.smem [#allocation2], 4
    %1415 = sst [smem:[%s1414]] %s719
    %s1416 = scalar_lea.smem [#allocation2], 5
    %1417 = sst [smem:[%s1416]] %s726
    %s1418 = scalar_lea.smem [#allocation2], 6
    %1419 = sst [smem:[%s1418]] %s1269
    %s1420 = scalar_lea.smem [#allocation2], 7
    %1421 = sst [smem:[%s1420]] %s1405
    %s1422 = sadd.f32 %s1269, %s688
    %s1423 = sadd.f32 %s1422, %s577
    %s1424 = scalar_lea.smem [#allocation2], 8
    %1425 = sst [smem:[%s1424]] %s1423
    // Predicated region
    $region42: #{_device_forward.1} parent=1 // pred_check
      _
    $region43: #{_device_forward.1} parent=1 // pred_check_branch
      %1427 = sbr.rel (0) target = $region45
    $region44: #{_device_forward.1} parent=1 // pred_region
      %s1429 = ssub.s32 16, 16
      %1430 = vsyncadd [#allocation3], %s1429
      %1433 = dma.smem_to_hbm [#allocation2], 16, %s10, [#allocation3]
    $region45: #{_device_forward.1} parent=1 // pred_fallthru
      _
    // Predicated region
    $region46: #{_device_forward.1} parent=1 // pred_check
      _
    $region47: #{_device_forward.1} parent=1 // pred_check_branch
      %1435 = sbr.rel (0) target = $region49
    $region48: #{_device_forward.1} parent=1 // pred_region
      %1436 = dma.done [#allocation3], 16
    $region49: #{_device_forward.1} parent=1 // pred_fallthru
      _
    %1437 = sfence
    %1438 = vsyncpa [#allocation3], 1

</llo_original>
